<compile_context>
chip_gen: v6e
topology: v6e:2x2x1
jax: 0.10.0
libtpu: 0.0.40
codegen_flags: <defaults>
</compile_context>

<pallas_src>
import functools

import jax
import jax.numpy as jnp
from jax import lax
from jax.experimental import pallas as pl
from jax.experimental.pallas import tpu as pltpu

HIDDEN = 512
LANE = 128


def _round_up(x, m):
    return (x + m - 1) // m * m


def _use_bf16_activations():
    """bf16 EUP/VPU exists on v6e/v7x; keep f32 activations on v5e and older."""
    try:
        kind = jax.devices()[0].device_kind.lower()
    except Exception:
        return False
    return not any(tag in kind for tag in ("v2", "v3", "v4", "v5"))


def ppo_fused_kernel(
    x_ref,            # [TB, S]        f32
    w1_ref, b1_ref,   # [S, 2H] bf16 , [1, 2H]  f32   (actor|critic layer 1 fused)
    aw2_ref, ab2_ref, # [H, H] bf16  , [1, H]   f32
    cw2_ref, cb2_ref, # [H, H] bf16  , [1, H]   f32
    w3_ref, b3_ref,   # [H, 128] bf16, [1, 128] f32   (actor|critic layer 3 fused, lane padded)
    out_ref,          # [TB, 128]      f32   (lanes [0,A)=actor sigmoid, lane A=critic)
    *, action_dim, act_dtype,
):
    bf16 = jnp.bfloat16
    x = x_ref[...].astype(bf16)

    # ---- fused layer 1 (shared input -> one MXU matmul, one tanh) ----
    y1 = jnp.dot(x, w1_ref[...], preferred_element_type=jnp.float32) + b1_ref[...]
    y1 = jnp.tanh(y1.astype(act_dtype))             # [TB, 2H]
    h = y1[:, :HIDDEN].astype(bf16)                 # actor hidden
    g = y1[:, HIDDEN:].astype(bf16)                 # critic hidden

    # ---- layer 2 (independent weights; two dots avoids doubling weight DMA) ----
    h2 = jnp.tanh(
        (jnp.dot(h, aw2_ref[...], preferred_element_type=jnp.float32)
         + ab2_ref[...]).astype(act_dtype)).astype(bf16)
    g2 = jnp.tanh(
        (jnp.dot(g, cw2_ref[...], preferred_element_type=jnp.float32)
         + cb2_ref[...]).astype(act_dtype)).astype(bf16)

    # ---- layer 3 + critic head: two dots sharing the same lane-padded RHS ----
    y3a = jnp.dot(h2, w3_ref[...], preferred_element_type=jnp.float32) + b3_ref[...]
    y3c = jnp.dot(g2, w3_ref[...], preferred_element_type=jnp.float32) + b3_ref[...]

    # sigmoid computed as 0.5*tanh(0.5*x)+0.5 (exact) so it rides the EUP slot.
    sig = 0.5 * jnp.tanh((0.5 * y3a).astype(act_dtype)).astype(jnp.float32) + 0.5

    # Lane select: actor lanes [0, action_dim) take sigmoid(y3a), the rest take y3c
    # (lane action_dim holds the critic value; higher lanes are zero-weight padding).
    lane = lax.broadcasted_iota(jnp.int32, y3a.shape, 1)
    out_ref[...] = jnp.where(lane < action_dim, sig, y3c)


def pack_params(p):
    """One-time fusion + bf16 cast of the six Linear layers for the kernel."""
    bf16 = jnp.bfloat16
    A = p["aw3"].shape[1]
    assert A + 1 <= LANE, (
        f"action_dim + 1 = {A + 1} must fit in one 128-lane output block")
    w1 = jnp.concatenate([p["aw1"], p["cw1"]], axis=1).astype(bf16)         # [S, 2H]
    b1 = jnp.concatenate([p["ab1"], p["cb1"]], axis=1).astype(jnp.float32)  # [1, 2H]
    w3 = jnp.zeros((HIDDEN, LANE), bf16)
    w3 = w3.at[:, :A].set(p["aw3"].astype(bf16))
    w3 = w3.at[:, A:A + 1].set(p["cw3"].astype(bf16))
    b3 = jnp.zeros((1, LANE), jnp.float32)
    b3 = b3.at[:, :A].set(p["ab3"]).at[:, A:A + 1].set(p["cb3"])
    return dict(
        w1=w1, b1=b1,
        aw2=p["aw2"].astype(bf16), ab2=p["ab2"].astype(jnp.float32),
        cw2=p["cw2"].astype(bf16), cb2=p["cb2"].astype(jnp.float32),
        w3=w3, b3=b3,
    )


def ppo_forward(state, packed, *, action_dim, bf16_act=False):
    """state: [B, state_dim] f32. packed: pack_params() output. Returns (actor, critic)."""
    B, S = state.shape

    # Tile selection: one tile up to 512 rows (no per-grid-step overhead); beyond that,
    # 512-row tiles that can shard across TensorCores. Small batches pad to a multiple
    # of 16 rows so bf16 hiddens stay fully vreg-packed.
    if B <= 4 * LANE:
        b_pad = _round_up(B, 16)
        tb = b_pad
    else:
        tb = 4 * LANE
        b_pad = _round_up(B, tb)
    nb = b_pad // tb

    x = state
    if b_pad != B:
        x = jnp.pad(state, ((0, b_pad - B), (0, 0)))

    const = lambda i: (0, 0)   # weights stay VMEM-resident across batch tiles

    act_dtype = jnp.bfloat16 if bf16_act else jnp.float32
    kernel = functools.partial(
        ppo_fused_kernel, action_dim=action_dim, act_dtype=act_dtype)

    # Advisory cost estimate (helps XLA schedule this inside a larger jitted step).
    flops = (2 * b_pad * S * 2 * HIDDEN
             + 2 * (2 * b_pad * HIDDEN * HIDDEN)
             + 2 * (2 * b_pad * HIDDEN * LANE))
    transcendentals = b_pad * (2 * HIDDEN + 2 * HIDDEN + LANE)
    weight_bytes = sum(int(v.size) * v.dtype.itemsize for v in packed.values())
    bytes_accessed = b_pad * S * 4 + weight_bytes + b_pad * LANE * 4

    out = pl.pallas_call(
        kernel,
        out_shape=jax.ShapeDtypeStruct((b_pad, LANE), jnp.float32),
        grid=(nb,),
        in_specs=[
            pl.BlockSpec((tb, S), lambda i: (i, 0)),
            pl.BlockSpec(packed["w1"].shape, const),
            pl.BlockSpec(packed["b1"].shape, const),
            pl.BlockSpec(packed["aw2"].shape, const),
            pl.BlockSpec(packed["ab2"].shape, const),
            pl.BlockSpec(packed["cw2"].shape, const),
            pl.BlockSpec(packed["cb2"].shape, const),
            pl.BlockSpec(packed["w3"].shape, const),
            pl.BlockSpec(packed["b3"].shape, const),
        ],
        out_specs=pl.BlockSpec((tb, LANE), lambda i: (i, 0)),
        compiler_params=pltpu.CompilerParams(
            dimension_semantics=("parallel",)),
        cost_estimate=pl.CostEstimate(
            flops=flops, transcendentals=transcendentals,
            bytes_accessed=bytes_accessed),
    )(x, packed["w1"], packed["b1"], packed["aw2"], packed["ab2"],
      packed["cw2"], packed["cb2"], packed["w3"], packed["b3"])

    actor = out[:B, :action_dim]
    critic = out[:B, action_dim:action_dim + 1]
    return actor, critic


def init_params(key, state_dim, action_dim, hidden=HIDDEN):
    """Deterministic synthetic init (PyTorch-style uniform(-1/sqrt(fan_in), ...))."""
    def linear(k, fan_in, fan_out):
        kw, kb = jax.random.split(k)
        bound = 1.0 / jnp.sqrt(jnp.float32(fan_in))
        w = jax.random.uniform(kw, (fan_in, fan_out), jnp.float32, -bound, bound)
        b = jax.random.uniform(kb, (1, fan_out), jnp.float32, -bound, bound)
        return w, b

    keys = jax.random.split(key, 6)
    aw1, ab1 = linear(keys[0], state_dim, hidden)
    aw2, ab2 = linear(keys[1], hidden, hidden)
    aw3, ab3 = linear(keys[2], hidden, action_dim)
    cw1, cb1 = linear(keys[3], state_dim, hidden)
    cw2, cb2 = linear(keys[4], hidden, hidden)
    cw3, cb3 = linear(keys[5], hidden, 1)
    # log_std parameter (not used in forward(), kept for parity with the module)
    log_std = jnp.ones((action_dim,), jnp.float32) * 0.1
    return dict(
        aw1=aw1, ab1=ab1, aw2=aw2, ab2=ab2, aw3=aw3, ab3=ab3,
        cw1=cw1, cb1=cb1, cw2=cw2, cb2=cb2, cw3=cw3, cb3=cb3,
        log_std=log_std,
    )


def ppo_forward_ref_f32(state, p):
    """Plain-JAX full-f32 reference (matches the PyTorch module)."""
    h = jnp.tanh(state @ p["aw1"] + p["ab1"])
    h = jnp.tanh(h @ p["aw2"] + p["ab2"])
    actor = jax.nn.sigmoid(h @ p["aw3"] + p["ab3"])
    g = jnp.tanh(state @ p["cw1"] + p["cb1"])
    g = jnp.tanh(g @ p["cw2"] + p["cb2"])
    critic = g @ p["cw3"] + p["cb3"]
    return actor, critic


def ppo_forward_ref_packed(state, packed, action_dim, bf16_act=False):
    """Plain-JAX reference mirroring the kernel's bf16-weight / f32-accumulate math."""
    bf16 = jnp.bfloat16
    act_dtype = bf16 if bf16_act else jnp.float32
    x = state.astype(bf16)
    y1 = jnp.tanh(
        (jnp.dot(x, packed["w1"], preferred_element_type=jnp.float32)
         + packed["b1"]).astype(act_dtype))
    h = y1[:, :HIDDEN].astype(bf16)
    g = y1[:, HIDDEN:].astype(bf16)
    h2 = jnp.tanh(
        (jnp.dot(h, packed["aw2"], preferred_element_type=jnp.float32)
         + packed["ab2"]).astype(act_dtype)).astype(bf16)
    g2 = jnp.tanh(
        (jnp.dot(g, packed["cw2"], preferred_element_type=jnp.float32)
         + packed["cb2"]).astype(act_dtype)).astype(bf16)
    ya = jnp.dot(h2, packed["w3"], preferred_element_type=jnp.float32) + packed["b3"]
    yc = jnp.dot(g2, packed["w3"], preferred_element_type=jnp.float32) + packed["b3"]
    sig = 0.5 * jnp.tanh((0.5 * ya).astype(act_dtype)).astype(jnp.float32) + 0.5
    actor = sig[:, :action_dim]
    critic = yc[:, action_dim:action_dim + 1]
    return actor, critic


if __name__ == "__main__":
    key = jax.random.PRNGKey(0)
    k_param, k_state = jax.random.split(key)

    batch = 8
    state_dim = 16
    action_dim = 4

    params = init_params(k_param, state_dim, action_dim)
    packed = pack_params(params)   # one-time fusion + bf16 cast (amortized over rollout)
    state = jax.random.normal(k_state, (batch, state_dim), jnp.float32)

    bf16_act = _use_bf16_activations()   # bf16 tanh/sigmoid on v6e/v7x, f32 on v5e-

    fwd = jax.jit(ppo_forward, static_argnames=("action_dim", "bf16_act"))
    actor_out, critic_out = fwd(state, packed, action_dim=action_dim,
                                bf16_act=bf16_act)
    jax.block_until_ready((actor_out, critic_out))

    assert actor_out.shape == (batch, action_dim)
    assert critic_out.shape == (batch, 1)

    # Tight check vs a plain-JAX reference doing the same bf16-weight math.
    a_bf, c_bf = ppo_forward_ref_packed(state, packed, action_dim, bf16_act=bf16_act)
    assert jnp.allclose(actor_out, a_bf, atol=5e-3, rtol=5e-3)
    assert jnp.allclose(critic_out, c_bf, atol=5e-3, rtol=5e-3)

    # Loose check vs the full-f32 PyTorch-equivalent reference (bf16 weight rounding).
    a_f32, c_f32 = ppo_forward_ref_f32(state, params)
    assert jnp.allclose(actor_out, a_f32, atol=5e-2, rtol=5e-2)
    assert jnp.allclose(critic_out, c_f32, atol=5e-2, rtol=5e-2)

    print("KERNEL_OK")
</pallas_src>

<mosaic_0001>
module attributes {stable_mosaic.version = 11 : i64} {
  func.func @ppo_fused_kernel(%arg0: i32, %arg1: memref<16x16xf32, #tpu.memory_space<vmem>>, %arg2: memref<16x1024xbf16, #tpu.memory_space<vmem>>, %arg3: memref<1x1024xf32, #tpu.memory_space<vmem>>, %arg4: memref<512x512xbf16, #tpu.memory_space<vmem>>, %arg5: memref<1x512xf32, #tpu.memory_space<vmem>>, %arg6: memref<512x512xbf16, #tpu.memory_space<vmem>>, %arg7: memref<1x512xf32, #tpu.memory_space<vmem>>, %arg8: memref<512x128xbf16, #tpu.memory_space<vmem>>, %arg9: memref<1x128xf32, #tpu.memory_space<vmem>>, %arg10: memref<16x128xf32, #tpu.memory_space<vmem>>) attributes {dimension_semantics = [#tpu.dimension_semantics<parallel>], iteration_bounds = array<i64: 1>, scalar_prefetch = 0 : i64, scratch_operands = 0 : i64, tpu.core_type = #tpu.core_type<tc>, window_params = [{transform_indices = @transform_0, window_bounds = array<i64: 16, 16>}, {pipeline_mode = #tpu.pipeline_mode<synchronous>, transform_indices = @transform_1, window_bounds = array<i64: 16, 1024>}, {pipeline_mode = #tpu.pipeline_mode<synchronous>, transform_indices = @transform_2, window_bounds = array<i64: 1, 1024>}, {pipeline_mode = #tpu.pipeline_mode<synchronous>, transform_indices = @transform_3, window_bounds = array<i64: 512, 512>}, {pipeline_mode = #tpu.pipeline_mode<synchronous>, transform_indices = @transform_4, window_bounds = array<i64: 1, 512>}, {pipeline_mode = #tpu.pipeline_mode<synchronous>, transform_indices = @transform_5, window_bounds = array<i64: 512, 512>}, {pipeline_mode = #tpu.pipeline_mode<synchronous>, transform_indices = @transform_6, window_bounds = array<i64: 1, 512>}, {pipeline_mode = #tpu.pipeline_mode<synchronous>, transform_indices = @transform_7, window_bounds = array<i64: 512, 128>}, {pipeline_mode = #tpu.pipeline_mode<synchronous>, transform_indices = @transform_8, window_bounds = array<i64: 1, 128>}, {transform_indices = @transform_9, window_bounds = array<i64: 16, 128>}]} {
    %c0 = arith.constant 0 : index
    %c0_0 = arith.constant 0 : index
    %0 = vector.load %arg1[%c0, %c0_0] : memref<16x16xf32, #tpu.memory_space<vmem>>, vector<16x16xf32>
    %1 = arith.truncf %0 : vector<16x16xf32> to vector<16x16xbf16>
    %c0_1 = arith.constant 0 : index
    %c0_2 = arith.constant 0 : index
    %2 = vector.load %arg2[%c0_1, %c0_2] : memref<16x1024xbf16, #tpu.memory_space<vmem>>, vector<16x1024xbf16>
    %cst = arith.constant dense<0.000000e+00> : vector<16x1024xf32>
    %3 = tpu.matmul %1, %2, %cst {dimension_numbers = #tpu.dot_dimension_numbers<[1], [0], [0], [1], [0, 0, 1, 1], [], []>} : vector<16x16xbf16>, vector<16x1024xbf16>, vector<16x1024xf32> -> vector<16x1024xf32>
    %c0_3 = arith.constant 0 : index
    %c0_4 = arith.constant 0 : index
    %4 = vector.load %arg3[%c0_3, %c0_4] : memref<1x1024xf32, #tpu.memory_space<vmem>>, vector<1x1024xf32>
    %5 = vector.broadcast %4 : vector<1x1024xf32> to vector<16x1024xf32>
    %6 = arith.addf %3, %5 : vector<16x1024xf32>
    %7 = arith.truncf %6 : vector<16x1024xf32> to vector<16x1024xbf16>
    %8 = math.tanh %7 : vector<16x1024xbf16>
    %9 = vector.extract_strided_slice %8 {offsets = [0, 0], sizes = [16, 512], strides = [1, 1]} : vector<16x1024xbf16> to vector<16x512xbf16>
    %10 = vector.extract_strided_slice %8 {offsets = [0, 512], sizes = [16, 512], strides = [1, 1]} : vector<16x1024xbf16> to vector<16x512xbf16>
    %c0_5 = arith.constant 0 : index
    %c0_6 = arith.constant 0 : index
    %11 = vector.load %arg4[%c0_5, %c0_6] : memref<512x512xbf16, #tpu.memory_space<vmem>>, vector<512x512xbf16>
    %cst_7 = arith.constant dense<0.000000e+00> : vector<16x512xf32>
    %12 = tpu.matmul %9, %11, %cst_7 {dimension_numbers = #tpu.dot_dimension_numbers<[1], [0], [0], [1], [0, 0, 1, 1], [], []>} : vector<16x512xbf16>, vector<512x512xbf16>, vector<16x512xf32> -> vector<16x512xf32>
    %c0_8 = arith.constant 0 : index
    %c0_9 = arith.constant 0 : index
    %13 = vector.load %arg5[%c0_8, %c0_9] : memref<1x512xf32, #tpu.memory_space<vmem>>, vector<1x512xf32>
    %14 = vector.broadcast %13 : vector<1x512xf32> to vector<16x512xf32>
    %15 = arith.addf %12, %14 : vector<16x512xf32>
    %16 = arith.truncf %15 : vector<16x512xf32> to vector<16x512xbf16>
    %17 = math.tanh %16 : vector<16x512xbf16>
    %c0_10 = arith.constant 0 : index
    %c0_11 = arith.constant 0 : index
    %18 = vector.load %arg6[%c0_10, %c0_11] : memref<512x512xbf16, #tpu.memory_space<vmem>>, vector<512x512xbf16>
    %cst_12 = arith.constant dense<0.000000e+00> : vector<16x512xf32>
    %19 = tpu.matmul %10, %18, %cst_12 {dimension_numbers = #tpu.dot_dimension_numbers<[1], [0], [0], [1], [0, 0, 1, 1], [], []>} : vector<16x512xbf16>, vector<512x512xbf16>, vector<16x512xf32> -> vector<16x512xf32>
    %c0_13 = arith.constant 0 : index
    %c0_14 = arith.constant 0 : index
    %20 = vector.load %arg7[%c0_13, %c0_14] : memref<1x512xf32, #tpu.memory_space<vmem>>, vector<1x512xf32>
    %21 = vector.broadcast %20 : vector<1x512xf32> to vector<16x512xf32>
    %22 = arith.addf %19, %21 : vector<16x512xf32>
    %23 = arith.truncf %22 : vector<16x512xf32> to vector<16x512xbf16>
    %24 = math.tanh %23 : vector<16x512xbf16>
    %c0_15 = arith.constant 0 : index
    %c0_16 = arith.constant 0 : index
    %25 = vector.load %arg8[%c0_15, %c0_16] : memref<512x128xbf16, #tpu.memory_space<vmem>>, vector<512x128xbf16>
    %cst_17 = arith.constant dense<0.000000e+00> : vector<16x128xf32>
    %26 = tpu.matmul %17, %25, %cst_17 {dimension_numbers = #tpu.dot_dimension_numbers<[1], [0], [0], [1], [0, 0, 1, 1], [], []>} : vector<16x512xbf16>, vector<512x128xbf16>, vector<16x128xf32> -> vector<16x128xf32>
    %c0_18 = arith.constant 0 : index
    %c0_19 = arith.constant 0 : index
    %27 = vector.load %arg9[%c0_18, %c0_19] : memref<1x128xf32, #tpu.memory_space<vmem>>, vector<1x128xf32>
    %28 = vector.broadcast %27 : vector<1x128xf32> to vector<16x128xf32>
    %29 = arith.addf %26, %28 : vector<16x128xf32>
    %c0_20 = arith.constant 0 : index
    %c0_21 = arith.constant 0 : index
    %30 = vector.load %arg8[%c0_20, %c0_21] : memref<512x128xbf16, #tpu.memory_space<vmem>>, vector<512x128xbf16>
    %cst_22 = arith.constant dense<0.000000e+00> : vector<16x128xf32>
    %31 = tpu.matmul %24, %30, %cst_22 {dimension_numbers = #tpu.dot_dimension_numbers<[1], [0], [0], [1], [0, 0, 1, 1], [], []>} : vector<16x512xbf16>, vector<512x128xbf16>, vector<16x128xf32> -> vector<16x128xf32>
    %c0_23 = arith.constant 0 : index
    %c0_24 = arith.constant 0 : index
    %32 = vector.load %arg9[%c0_23, %c0_24] : memref<1x128xf32, #tpu.memory_space<vmem>>, vector<1x128xf32>
    %33 = vector.broadcast %32 : vector<1x128xf32> to vector<16x128xf32>
    %34 = arith.addf %31, %33 : vector<16x128xf32>
    %cst_25 = arith.constant 5.000000e-01 : f32
    %35 = vector.broadcast %cst_25 : f32 to vector<16x128xf32>
    %36 = arith.mulf %35, %29 : vector<16x128xf32>
    %37 = arith.truncf %36 : vector<16x128xf32> to vector<16x128xbf16>
    %38 = math.tanh %37 : vector<16x128xbf16>
    %39 = arith.extf %38 : vector<16x128xbf16> to vector<16x128xf32>
    %cst_26 = arith.constant 5.000000e-01 : f32
    %40 = vector.broadcast %cst_26 : f32 to vector<16x128xf32>
    %41 = arith.mulf %40, %39 : vector<16x128xf32>
    %cst_27 = arith.constant 5.000000e-01 : f32
    %42 = vector.broadcast %cst_27 : f32 to vector<16x128xf32>
    %43 = arith.addf %41, %42 : vector<16x128xf32>
    %44 = tpu.iota {dimensions = array<i32: 1>} : vector<16x128xi32>
    %c4_i32 = arith.constant 4 : i32
    %45 = vector.broadcast %c4_i32 : i32 to vector<16x128xi32>
    %46 = arith.cmpi slt, %44, %45 : vector<16x128xi32>
    %47 = arith.select %46, %43, %34 : vector<16x128xi1>, vector<16x128xf32>
    %c0_28 = arith.constant 0 : index
    %c0_29 = arith.constant 0 : index
    %48 = vector.load %arg10[%c0_28, %c0_29] : memref<16x128xf32, #tpu.memory_space<vmem>>, vector<16x128xf32>
    tpu.vector_store %arg10[%c0_28, %c0_29], %47 {strides = array<i32>} : memref<16x128xf32, #tpu.memory_space<vmem>>, vector<16x128xf32>,
    return
  }
  func.func @transform_0(%arg0: i32) -> (i32, i32) {
    %c0_i32 = arith.constant 0 : i32
    %c0_i32_0 = arith.constant 0 : i32
    return %arg0, %c0_i32 : i32, i32
  }
  func.func @transform_1(%arg0: i32) -> (i32, i32) {
    %c0_i32 = arith.constant 0 : i32
    %c0_i32_0 = arith.constant 0 : i32
    %c0_i32_1 = arith.constant 0 : i32
    return %c0_i32, %c0_i32_0 : i32, i32
  }
  func.func @transform_2(%arg0: i32) -> (i32, i32) {
    %c0_i32 = arith.constant 0 : i32
    %c0_i32_0 = arith.constant 0 : i32
    %c0_i32_1 = arith.constant 0 : i32
    return %c0_i32, %c0_i32_0 : i32, i32
  }
  func.func @transform_3(%arg0: i32) -> (i32, i32) {
    %c0_i32 = arith.constant 0 : i32
    %c0_i32_0 = arith.constant 0 : i32
    %c0_i32_1 = arith.constant 0 : i32
    return %c0_i32, %c0_i32_0 : i32, i32
  }
  func.func @transform_4(%arg0: i32) -> (i32, i32) {
    %c0_i32 = arith.constant 0 : i32
    %c0_i32_0 = arith.constant 0 : i32
    %c0_i32_1 = arith.constant 0 : i32
    return %c0_i32, %c0_i32_0 : i32, i32
  }
  func.func @transform_5(%arg0: i32) -> (i32, i32) {
    %c0_i32 = arith.constant 0 : i32
    %c0_i32_0 = arith.constant 0 : i32
    %c0_i32_1 = arith.constant 0 : i32
    return %c0_i32, %c0_i32_0 : i32, i32
  }
  func.func @transform_6(%arg0: i32) -> (i32, i32) {
    %c0_i32 = arith.constant 0 : i32
    %c0_i32_0 = arith.constant 0 : i32
    %c0_i32_1 = arith.constant 0 : i32
    return %c0_i32, %c0_i32_0 : i32, i32
  }
  func.func @transform_7(%arg0: i32) -> (i32, i32) {
    %c0_i32 = arith.constant 0 : i32
    %c0_i32_0 = arith.constant 0 : i32
    %c0_i32_1 = arith.constant 0 : i32
    return %c0_i32, %c0_i32_0 : i32, i32
  }
  func.func @transform_8(%arg0: i32) -> (i32, i32) {
    %c0_i32 = arith.constant 0 : i32
    %c0_i32_0 = arith.constant 0 : i32
    %c0_i32_1 = arith.constant 0 : i32
    return %c0_i32, %c0_i32_0 : i32, i32
  }
  func.func @transform_9(%arg0: i32) -> (i32, i32) {
    %c0_i32 = arith.constant 0 : i32
    %c0_i32_0 = arith.constant 0 : i32
    return %arg0, %c0_i32 : i32, i32
  }
}

</mosaic_0001>

<llo_original>
// kernel: ppo_forward.1
$region0: #{ppo_forward.1}
  #allocation0 [shape = 'u32[]', space=smem, size = 0x4, offset = 0x4, fixed_abs, tag = 'smem constant byte address 0x4 - core index']
  #allocation1 [shape = 'u32[144,128]{1,0:T(1,128)}', space=vmem, size = 0x12000, scoped, tag = 'internal scratch']
  %s0 = inlined_call_operand.vmem [shape: f32[16,16], index: 0, kind: input, shape index: {}]
  %s1 = inlined_call_operand.hbm [shape: bf16[16,1024], index: 1, kind: input, shape index: {}]
  %s2 = inlined_call_operand.vmem [shape: f32[1,1024], index: 2, kind: input, shape index: {}]
  %s3 = inlined_call_operand.hbm [shape: bf16[512,512], index: 3, kind: input, shape index: {}]
  %s4 = inlined_call_operand.vmem [shape: f32[1,512], index: 4, kind: input, shape index: {}]
  %s5 = inlined_call_operand.hbm [shape: bf16[512,512], index: 5, kind: input, shape index: {}]
  %s6 = inlined_call_operand.vmem [shape: f32[1,512], index: 6, kind: input, shape index: {}]
  %s7 = inlined_call_operand.hbm [shape: bf16[512,128], index: 7, kind: input, shape index: {}]
  %s8 = inlined_call_operand.vmem [shape: f32[1,128], index: 8, kind: input, shape index: {}]
  %s9 = inlined_call_operand.vmem [shape: f32[16,128], index: 9, kind: output, shape index: {}]
  %s10 = sld [smem:[#allocation0]]
  $region62: #{ppo_forward.1} parent=0
    _
  %s12 = ssub.s32 1, %s10
  %s13 = scalar_select 0, %s12, %s10
  $region1: #{ppo_forward.1} parent=0
    #allocation2 [shape = 'u8[32768]{0}', space=vmem, size = 0x8000, scoped, tag = 'input window, operand 1, single buffered']
    #allocation3 [shape = 's32[1]{0}', space=sflag, size = 0x4, scoped, tag = 'scoped memory for ppo_forward.1']
    #allocation4 [shape = 'u8[524288]{0}', space=vmem, size = 0x80000, scoped, tag = 'input window, operand 3, single buffered']
    #allocation5 [shape = 's32[1]{0}', space=sflag, size = 0x4, scoped, tag = 'scoped memory for ppo_forward.1']
    #allocation6 [shape = 'u8[524288]{0}', space=vmem, size = 0x80000, scoped, tag = 'input window, operand 5, single buffered']
    #allocation7 [shape = 'u8[131072]{0}', space=vmem, size = 0x20000, scoped, tag = 'input window, operand 7, single buffered']
    #allocation8 [shape = 's32[1]{0}', space=sflag, size = 0x4, scoped, tag = 'scoped memory for ppo_forward.1']
    %14 = vsyncpa [#allocation3], 0
    %15 = vsyncpa [#allocation5], 0
    %16 = vsyncpa [#allocation8], 0
    // Predicated region
    $region2: #{ppo_forward.1} parent=1 // pred_check
      _
    $region3: #{ppo_forward.1} parent=1 // pred_check_branch
      %18 = sbr.rel (0) target = $region5
    $region4: #{ppo_forward.1} parent=1 // pred_region
      _
    $region5: #{ppo_forward.1} parent=1 // pred_fallthru
      _
    // Predicated region
    $region6: #{ppo_forward.1} parent=1 // pred_check
      _
    $region7: #{ppo_forward.1} parent=1 // pred_check_branch
      %20 = sbr.rel (0) target = $region9
    $region8: #{ppo_forward.1} parent=1 // pred_region
      %s22 = ssub.s32 1024, 1024
      %23 = vsyncadd [#allocation3], %s22
      %s24 = sshll.u32 [#allocation2], 4
      %s25 = int_to_ptr.vmem [resolvable:$true] %s24
      %30 = dma.hbm_to_vmem [thread:$0]  %s1, 1024, %s25, [#allocation3], 512, 512, 32
    $region9: #{ppo_forward.1} parent=1 // pred_fallthru
      _
    // Predicated region
    $region10: #{ppo_forward.1} parent=1 // pred_check
      _
    $region11: #{ppo_forward.1} parent=1 // pred_check_branch
      %32 = sbr.rel (0) target = $region13
    $region12: #{ppo_forward.1} parent=1 // pred_region
      _
    $region13: #{ppo_forward.1} parent=1 // pred_fallthru
      _
    // Predicated region
    $region14: #{ppo_forward.1} parent=1 // pred_check
      _
    $region15: #{ppo_forward.1} parent=1 // pred_check_branch
      %34 = sbr.rel (0) target = $region17
    $region16: #{ppo_forward.1} parent=1 // pred_region
      %s36 = ssub.s32 16384, 16384
      %37 = vsyncadd [#allocation5], %s36
      %s38 = sshll.u32 [#allocation4], 4
      %s39 = int_to_ptr.vmem [resolvable:$true] %s38
      %44 = dma.hbm_to_vmem [thread:$0]  %s3, 16384, %s39, [#allocation5], 256, 256, 16
    $region17: #{ppo_forward.1} parent=1 // pred_fallthru
      _
    // Predicated region
    $region18: #{ppo_forward.1} parent=1 // pred_check
      _
    $region19: #{ppo_forward.1} parent=1 // pred_check_branch
      %46 = sbr.rel (0) target = $region21
    $region20: #{ppo_forward.1} parent=1 // pred_region
      _
    $region21: #{ppo_forward.1} parent=1 // pred_fallthru
      _
    // Predicated region
    $region22: #{ppo_forward.1} parent=1 // pred_check
      _
    $region23: #{ppo_forward.1} parent=1 // pred_check_branch
      %48 = sbr.rel (0) target = $region25
    $region24: #{ppo_forward.1} parent=1 // pred_region
      %s50 = ssub.s32 16384, 16384
      %51 = vsyncadd [#allocation5], %s50
      %s52 = sshll.u32 [#allocation6], 4
      %s53 = int_to_ptr.vmem [resolvable:$true] %s52
      %58 = dma.hbm_to_vmem [thread:$0]  %s5, 16384, %s53, [#allocation5], 256, 256, 16
    $region25: #{ppo_forward.1} parent=1 // pred_fallthru
      _
    // Predicated region
    $region26: #{ppo_forward.1} parent=1 // pred_check
      _
    $region27: #{ppo_forward.1} parent=1 // pred_check_branch
      %60 = sbr.rel (0) target = $region29
    $region28: #{ppo_forward.1} parent=1 // pred_region
      _
    $region29: #{ppo_forward.1} parent=1 // pred_fallthru
      _
    // Predicated region
    $region30: #{ppo_forward.1} parent=1 // pred_check
      _
    $region31: #{ppo_forward.1} parent=1 // pred_check_branch
      %62 = sbr.rel (0) target = $region33
    $region32: #{ppo_forward.1} parent=1 // pred_region
      %s64 = ssub.s32 4096, 4096
      %65 = vsyncadd [#allocation8], %s64
      %s66 = sshll.u32 [#allocation7], 4
      %s67 = int_to_ptr.vmem [resolvable:$true] %s66
      %72 = dma.hbm_to_vmem [thread:$0]  %s7, 4096, %s67, [#allocation8], 64, 64, 4
    $region33: #{ppo_forward.1} parent=1 // pred_fallthru
      _
    // Predicated region
    $region34: #{ppo_forward.1} parent=1 // pred_check
      _
    $region35: #{ppo_forward.1} parent=1 // pred_check_branch
      %74 = sbr.rel (0) target = $region37
    $region36: #{ppo_forward.1} parent=1 // pred_region
      _
    $region37: #{ppo_forward.1} parent=1 // pred_fallthru
      _
    // Predicated region
    $region38: #{ppo_forward.1} parent=1 // pred_check
      _
    $region39: #{ppo_forward.1} parent=1 // pred_check_branch
      %76 = sbr.rel (0) target = $region41
    $region40: #{ppo_forward.1} parent=1 // pred_region
      %77 = dma.done [#allocation3], 1024
    $region41: #{ppo_forward.1} parent=1 // pred_fallthru
      _
    // Predicated region
    $region42: #{ppo_forward.1} parent=1 // pred_check
      _
    $region43: #{ppo_forward.1} parent=1 // pred_check_branch
      %79 = sbr.rel (0) target = $region45
    $region44: #{ppo_forward.1} parent=1 // pred_region
      %80 = dma.done [#allocation5], 16384
    $region45: #{ppo_forward.1} parent=1 // pred_fallthru
      _
    // Predicated region
    $region46: #{ppo_forward.1} parent=1 // pred_check
      _
    $region47: #{ppo_forward.1} parent=1 // pred_check_branch
      %82 = sbr.rel (0) target = $region49
    $region48: #{ppo_forward.1} parent=1 // pred_region
      %83 = dma.done [#allocation5], 16384
    $region49: #{ppo_forward.1} parent=1 // pred_fallthru
      _
    // Predicated region
    $region50: #{ppo_forward.1} parent=1 // pred_check
      _
    $region51: #{ppo_forward.1} parent=1 // pred_check_branch
      %85 = sbr.rel (0) target = $region53
    $region52: #{ppo_forward.1} parent=1 // pred_region
      %86 = dma.done [#allocation8], 4096
    $region53: #{ppo_forward.1} parent=1 // pred_fallthru
      _
    %v88 = vld [vmem:[%s0] sm:$0xff]
    %v89 = vld [vmem:[%s0 + $0x8] sm:$0xff]
    %v90 = vpack.c.bf16 %v89, %v88
    %v91 = vld [vmem:[#allocation2] sm:$0xff]
    %v92 = vld [vmem:[#allocation2 + $0x8] sm:$0xff]
    %v93 = vld [vmem:[#allocation2 + $0x10] sm:$0xff]
    %v94 = vld [vmem:[#allocation2 + $0x18] sm:$0xff]
    %v95 = vld [vmem:[#allocation2 + $0x20] sm:$0xff]
    %v96 = vld [vmem:[#allocation2 + $0x28] sm:$0xff]
    %v97 = vld [vmem:[#allocation2 + $0x30] sm:$0xff]
    %v98 = vld [vmem:[#allocation2 + $0x38] sm:$0xff]
    %v99 = vld [vmem:[%s2] sm:$0xff]
    %v101 = vlaneseq
    %v102 = vshrl.u32 %v101, 7
    %v103 = vsub.s32 0, %v102
    %v104 = vrot.slane %v99, %v103
    %v105 = vlaneseq
    %v106 = vshrl.u32 %v105, 7
    %v107 = vsub.s32 1, %v106
    %v108 = vrot.slane %v99, %v107
    %v109 = vlaneseq
    %v110 = vshrl.u32 %v109, 7
    %v111 = vsub.s32 2, %v110
    %v112 = vrot.slane %v99, %v111
    %v113 = vlaneseq
    %v114 = vshrl.u32 %v113, 7
    %v115 = vsub.s32 3, %v114
    %v116 = vrot.slane %v99, %v115
    %v117 = vlaneseq
    %v118 = vshrl.u32 %v117, 7
    %v119 = vsub.s32 4, %v118
    %v120 = vrot.slane %v99, %v119
    %v121 = vlaneseq
    %v122 = vshrl.u32 %v121, 7
    %v123 = vsub.s32 5, %v122
    %v124 = vrot.slane %v99, %v123
    %v125 = vlaneseq
    %v126 = vshrl.u32 %v125, 7
    %v127 = vsub.s32 6, %v126
    %v128 = vrot.slane %v99, %v127
    %v129 = vlaneseq
    %v130 = vshrl.u32 %v129, 7
    %v131 = vsub.s32 7, %v130
    %v132 = vrot.slane %v99, %v131
    %v149 = vunpack.c.l.b16 %v91
    %v150 = vunpack.c.h.b16 %v91
    %v151 = vunpack.c.l.b16 %v92
    %v152 = vunpack.c.h.b16 %v92
    %v153 = vunpack.c.l.b16 %v93
    %v154 = vunpack.c.h.b16 %v93
    %v155 = vunpack.c.l.b16 %v94
    %v156 = vunpack.c.h.b16 %v94
    %v157 = vunpack.c.l.b16 %v95
    %v158 = vunpack.c.h.b16 %v95
    %v159 = vunpack.c.l.b16 %v96
    %v160 = vunpack.c.h.b16 %v96
    %v161 = vunpack.c.l.b16 %v97
    %v162 = vunpack.c.h.b16 %v97
    %v163 = vunpack.c.l.b16 %v98
    %v164 = vunpack.c.h.b16 %v98
    %v165 = vpack.c.b16 %v157, %v149
    %v166 = vpack.c.b16 %v158, %v150
    %v167 = vpack.c.b16 %v159, %v151
    %v168 = vpack.c.b16 %v160, %v152
    %v169 = vpack.c.b16 %v161, %v153
    %v170 = vpack.c.b16 %v162, %v154
    %v171 = vpack.c.b16 %v163, %v155
    %v172 = vpack.c.b16 %v164, %v156
    %vm181 = vcmask 130048
    %v183 = vsel %vm181, %v90, 0
    %185 = vmatprep.subr.bf16.mxu0 0
    %186 = vmatpush1.bf16.msra.mxu0 0
    %187 = vmatprep.subr.bf16.mxu0 0
    %188 = vmatpush1.bf16.msra.mxu0 0
    %189 = vmatprep.subr.bf16.mxu0 0
    %190 = vmatpush1.bf16.msra.mxu0 0
    %191 = vmatprep.subr.bf16.mxu0 0
    %192 = vmatpush1.bf16.msra.mxu0 0
    %193 = vmatprep.subr.bf16.mxu0 0
    %194 = vmatpush1.bf16.msra.mxu0 0
    %195 = vmatprep.subr.bf16.mxu0 0
    %196 = vmatpush1.bf16.msra.mxu0 0
    %197 = vmatprep.subr.bf16.mxu0 0
    %198 = vmatpush1.bf16.msra.mxu0 0
    %199 = vmatprep.subr.bf16.mxu0 %v166
    %200 = vmatpush1.bf16.msra.mxu0 %v165
    %201 = vmatprep.subr.bf16.mxu0 0
    %202 = vmatpush2.bf16.msra.mxu0 0
    %203 = vmatprep.subr.bf16.mxu0 0
    %204 = vmatpush2.bf16.msra.mxu0 0
    %205 = vmatprep.subr.bf16.mxu0 0
    %206 = vmatpush2.bf16.msra.mxu0 0
    %207 = vmatprep.subr.bf16.mxu0 0
    %208 = vmatpush2.bf16.msra.mxu0 0
    %209 = vmatprep.subr.bf16.mxu0 0
    %210 = vmatpush2.bf16.msra.mxu0 0
    %211 = vmatprep.subr.bf16.mxu0 0
    %212 = vmatpush2.bf16.msra.mxu0 0
    %213 = vmatprep.subr.bf16.mxu0 0
    %214 = vmatpush2.bf16.msra.mxu0 0
    %215 = vmatprep.subr.bf16.mxu0 0
    %216 = vmatpush2.bf16.msra.mxu0 0
    %217 = vmatprep.mubr.bf16.mxu0 0
    %218 = vmatmul.mubr.bf16.gmra.mxu0 %v183
    %v219 = vpop.f32.mrf.mxu0
    %v220 = vadd.f32 %v104, %v219
    %v221 = vpop.f32.mrf.mxu0
    %v222 = vadd.f32 %v108, %v221
    %v223 = vpop.f32.mrf.mxu0
    %v224 = vadd.f32 %v104, %v223
    %v225 = vpop.f32.mrf.mxu0
    %v226 = vadd.f32 %v108, %v225
    %227 = vdwg.mxu0
    %228 = vmatprep.subr.bf16.mxu0 0
    %229 = vmatpush1.bf16.msra.mxu0 0
    %230 = vmatprep.subr.bf16.mxu0 0
    %231 = vmatpush1.bf16.msra.mxu0 0
    %232 = vmatprep.subr.bf16.mxu0 0
    %233 = vmatpush1.bf16.msra.mxu0 0
    %234 = vmatprep.subr.bf16.mxu0 0
    %235 = vmatpush1.bf16.msra.mxu0 0
    %236 = vmatprep.subr.bf16.mxu0 0
    %237 = vmatpush1.bf16.msra.mxu0 0
    %238 = vmatprep.subr.bf16.mxu0 0
    %239 = vmatpush1.bf16.msra.mxu0 0
    %240 = vmatprep.subr.bf16.mxu0 0
    %241 = vmatpush1.bf16.msra.mxu0 0
    %242 = vmatprep.subr.bf16.mxu0 %v168
    %243 = vmatpush1.bf16.msra.mxu0 %v167
    %244 = vmatprep.subr.bf16.mxu0 0
    %245 = vmatpush2.bf16.msra.mxu0 0
    %246 = vmatprep.subr.bf16.mxu0 0
    %247 = vmatpush2.bf16.msra.mxu0 0
    %248 = vmatprep.subr.bf16.mxu0 0
    %249 = vmatpush2.bf16.msra.mxu0 0
    %250 = vmatprep.subr.bf16.mxu0 0
    %251 = vmatpush2.bf16.msra.mxu0 0
    %252 = vmatprep.subr.bf16.mxu0 0
    %253 = vmatpush2.bf16.msra.mxu0 0
    %254 = vmatprep.subr.bf16.mxu0 0
    %255 = vmatpush2.bf16.msra.mxu0 0
    %256 = vmatprep.subr.bf16.mxu0 0
    %257 = vmatpush2.bf16.msra.mxu0 0
    %258 = vmatprep.subr.bf16.mxu0 0
    %259 = vmatpush2.bf16.msra.mxu0 0
    %260 = vmatprep.mubr.bf16.mxu0 0
    %261 = vmatmul.mubr.bf16.gmra.mxu0 %v183
    %v262 = vpop.f32.mrf.mxu0
    %v263 = vadd.f32 %v112, %v262
    %v264 = vpop.f32.mrf.mxu0
    %v265 = vadd.f32 %v116, %v264
    %v266 = vpop.f32.mrf.mxu0
    %v267 = vadd.f32 %v112, %v266
    %v268 = vpop.f32.mrf.mxu0
    %v269 = vadd.f32 %v116, %v268
    %270 = vdwg.mxu0
    %271 = vmatprep.subr.bf16.mxu0 0
    %272 = vmatpush1.bf16.msra.mxu0 0
    %273 = vmatprep.subr.bf16.mxu0 0
    %274 = vmatpush1.bf16.msra.mxu0 0
    %275 = vmatprep.subr.bf16.mxu0 0
    %276 = vmatpush1.bf16.msra.mxu0 0
    %277 = vmatprep.subr.bf16.mxu0 0
    %278 = vmatpush1.bf16.msra.mxu0 0
    %279 = vmatprep.subr.bf16.mxu0 0
    %280 = vmatpush1.bf16.msra.mxu0 0
    %281 = vmatprep.subr.bf16.mxu0 0
    %282 = vmatpush1.bf16.msra.mxu0 0
    %283 = vmatprep.subr.bf16.mxu0 0
    %284 = vmatpush1.bf16.msra.mxu0 0
    %285 = vmatprep.subr.bf16.mxu0 %v170
    %286 = vmatpush1.bf16.msra.mxu0 %v169
    %287 = vmatprep.subr.bf16.mxu0 0
    %288 = vmatpush2.bf16.msra.mxu0 0
    %289 = vmatprep.subr.bf16.mxu0 0
    %290 = vmatpush2.bf16.msra.mxu0 0
    %291 = vmatprep.subr.bf16.mxu0 0
    %292 = vmatpush2.bf16.msra.mxu0 0
    %293 = vmatprep.subr.bf16.mxu0 0
    %294 = vmatpush2.bf16.msra.mxu0 0
    %295 = vmatprep.subr.bf16.mxu0 0
    %296 = vmatpush2.bf16.msra.mxu0 0
    %297 = vmatprep.subr.bf16.mxu0 0
    %298 = vmatpush2.bf16.msra.mxu0 0
    %299 = vmatprep.subr.bf16.mxu0 0
    %300 = vmatpush2.bf16.msra.mxu0 0
    %301 = vmatprep.subr.bf16.mxu0 0
    %302 = vmatpush2.bf16.msra.mxu0 0
    %303 = vmatprep.mubr.bf16.mxu0 0
    %304 = vmatmul.mubr.bf16.gmra.mxu0 %v183
    %v305 = vpop.f32.mrf.mxu0
    %v306 = vadd.f32 %v120, %v305
    %v307 = vpop.f32.mrf.mxu0
    %v308 = vadd.f32 %v124, %v307
    %v309 = vpop.f32.mrf.mxu0
    %v310 = vadd.f32 %v120, %v309
    %v311 = vpop.f32.mrf.mxu0
    %v312 = vadd.f32 %v124, %v311
    %313 = vdwg.mxu0
    %314 = vmatprep.subr.bf16.mxu0 0
    %315 = vmatpush1.bf16.msra.mxu0 0
    %316 = vmatprep.subr.bf16.mxu0 0
    %317 = vmatpush1.bf16.msra.mxu0 0
    %318 = vmatprep.subr.bf16.mxu0 0
    %319 = vmatpush1.bf16.msra.mxu0 0
    %320 = vmatprep.subr.bf16.mxu0 0
    %321 = vmatpush1.bf16.msra.mxu0 0
    %322 = vmatprep.subr.bf16.mxu0 0
    %323 = vmatpush1.bf16.msra.mxu0 0
    %324 = vmatprep.subr.bf16.mxu0 0
    %325 = vmatpush1.bf16.msra.mxu0 0
    %326 = vmatprep.subr.bf16.mxu0 0
    %327 = vmatpush1.bf16.msra.mxu0 0
    %328 = vmatprep.subr.bf16.mxu0 %v172
    %329 = vmatpush1.bf16.msra.mxu0 %v171
    %330 = vmatprep.subr.bf16.mxu0 0
    %331 = vmatpush2.bf16.msra.mxu0 0
    %332 = vmatprep.subr.bf16.mxu0 0
    %333 = vmatpush2.bf16.msra.mxu0 0
    %334 = vmatprep.subr.bf16.mxu0 0
    %335 = vmatpush2.bf16.msra.mxu0 0
    %336 = vmatprep.subr.bf16.mxu0 0
    %337 = vmatpush2.bf16.msra.mxu0 0
    %338 = vmatprep.subr.bf16.mxu0 0
    %339 = vmatpush2.bf16.msra.mxu0 0
    %340 = vmatprep.subr.bf16.mxu0 0
    %341 = vmatpush2.bf16.msra.mxu0 0
    %342 = vmatprep.subr.bf16.mxu0 0
    %343 = vmatpush2.bf16.msra.mxu0 0
    %344 = vmatprep.subr.bf16.mxu0 0
    %345 = vmatpush2.bf16.msra.mxu0 0
    %346 = vmatprep.mubr.bf16.mxu0 0
    %347 = vmatmul.mubr.bf16.gmra.mxu0 %v183
    %v348 = vpop.f32.mrf.mxu0
    %v349 = vadd.f32 %v128, %v348
    %v350 = vpop.f32.mrf.mxu0
    %v351 = vadd.f32 %v132, %v350
    %v352 = vpop.f32.mrf.mxu0
    %v353 = vadd.f32 %v128, %v352
    %v354 = vpop.f32.mrf.mxu0
    %v355 = vadd.f32 %v132, %v354
    %356 = vdwg.mxu0
    %v357 = vpack.c.bf16 %v224, %v220
    %v358 = vpack.c.bf16 %v226, %v222
    %v359 = vpack.c.bf16 %v267, %v263
    %v360 = vpack.c.bf16 %v269, %v265
    %v361 = vpack.c.bf16 %v310, %v306
    %v362 = vpack.c.bf16 %v312, %v308
    %v363 = vpack.c.bf16 %v353, %v349
    %v364 = vpack.c.bf16 %v355, %v351
    %v365 = vtanh.bf16.pop %v357
    %v366 = vtanh.bf16.pop %v358
    %v367 = vtanh.bf16.pop %v359
    %v368 = vtanh.bf16.pop %v360
    %v369 = vtanh.bf16.pop %v361
    %v370 = vtanh.bf16.pop %v362
    %v371 = vtanh.bf16.pop %v363
    %v372 = vtanh.bf16.pop %v364
    %v373 = vld [vmem:[#allocation4] sm:$0xff]
    %v374 = vld [vmem:[#allocation4 + $0x8] sm:$0xff]
    %v375 = vld [vmem:[#allocation4 + $0x10] sm:$0xff]
    %v376 = vld [vmem:[#allocation4 + $0x18] sm:$0xff]
    %v377 = vld [vmem:[#allocation4 + $0x20] sm:$0xff]
    %v378 = vld [vmem:[#allocation4 + $0x28] sm:$0xff]
    %v379 = vld [vmem:[#allocation4 + $0x30] sm:$0xff]
    %v380 = vld [vmem:[#allocation4 + $0x38] sm:$0xff]
    %v381 = vld [vmem:[#allocation4 + $0x40] sm:$0xff]
    %v382 = vld [vmem:[#allocation4 + $0x48] sm:$0xff]
    %v383 = vld [vmem:[#allocation4 + $0x50] sm:$0xff]
    %v384 = vld [vmem:[#allocation4 + $0x58] sm:$0xff]
    %v385 = vld [vmem:[#allocation4 + $0x60] sm:$0xff]
    %v386 = vld [vmem:[#allocation4 + $0x68] sm:$0xff]
    %v387 = vld [vmem:[#allocation4 + $0x70] sm:$0xff]
    %v388 = vld [vmem:[#allocation4 + $0x78] sm:$0xff]
    %v389 = vld [vmem:[#allocation4 + $0x80] sm:$0xff]
    %v390 = vld [vmem:[#allocation4 + $0x88] sm:$0xff]
    %v391 = vld [vmem:[#allocation4 + $0x90] sm:$0xff]
    %v392 = vld [vmem:[#allocation4 + $0x98] sm:$0xff]
    %v393 = vld [vmem:[#allocation4 + $0xa0] sm:$0xff]
    %v394 = vld [vmem:[#allocation4 + $0xa8] sm:$0xff]
    %v395 = vld [vmem:[#allocation4 + $0xb0] sm:$0xff]
    %v396 = vld [vmem:[#allocation4 + $0xb8] sm:$0xff]
    %v397 = vld [vmem:[#allocation4 + $0xc0] sm:$0xff]
    %v398 = vld [vmem:[#allocation4 + $0xc8] sm:$0xff]
    %v399 = vld [vmem:[#allocation4 + $0xd0] sm:$0xff]
    %v400 = vld [vmem:[#allocation4 + $0xd8] sm:$0xff]
    %v401 = vld [vmem:[#allocation4 + $0xe0] sm:$0xff]
    %v402 = vld [vmem:[#allocation4 + $0xe8] sm:$0xff]
    %v403 = vld [vmem:[#allocation4 + $0xf0] sm:$0xff]
    %v404 = vld [vmem:[#allocation4 + $0xf8] sm:$0xff]
    %v405 = vld [vmem:[#allocation4 + $0x100] sm:$0xff]
    %v406 = vld [vmem:[#allocation4 + $0x108] sm:$0xff]
    %v407 = vld [vmem:[#allocation4 + $0x110] sm:$0xff]
    %v408 = vld [vmem:[#allocation4 + $0x118] sm:$0xff]
    %v409 = vld [vmem:[#allocation4 + $0x120] sm:$0xff]
    %v410 = vld [vmem:[#allocation4 + $0x128] sm:$0xff]
    %v411 = vld [vmem:[#allocation4 + $0x130] sm:$0xff]
    %v412 = vld [vmem:[#allocation4 + $0x138] sm:$0xff]
    %v413 = vld [vmem:[#allocation4 + $0x140] sm:$0xff]
    %v414 = vld [vmem:[#allocation4 + $0x148] sm:$0xff]
    %v415 = vld [vmem:[#allocation4 + $0x150] sm:$0xff]
    %v416 = vld [vmem:[#allocation4 + $0x158] sm:$0xff]
    %v417 = vld [vmem:[#allocation4 + $0x160] sm:$0xff]
    %v418 = vld [vmem:[#allocation4 + $0x168] sm:$0xff]
    %v419 = vld [vmem:[#allocation4 + $0x170] sm:$0xff]
    %v420 = vld [vmem:[#allocation4 + $0x178] sm:$0xff]
    %v421 = vld [vmem:[#allocation4 + $0x180] sm:$0xff]
    %v422 = vld [vmem:[#allocation4 + $0x188] sm:$0xff]
    %v423 = vld [vmem:[#allocation4 + $0x190] sm:$0xff]
    %v424 = vld [vmem:[#allocation4 + $0x198] sm:$0xff]
    %v425 = vld [vmem:[#allocation4 + $0x1a0] sm:$0xff]
    %v426 = vld [vmem:[#allocation4 + $0x1a8] sm:$0xff]
    %v427 = vld [vmem:[#allocation4 + $0x1b0] sm:$0xff]
    %v428 = vld [vmem:[#allocation4 + $0x1b8] sm:$0xff]
    %v429 = vld [vmem:[#allocation4 + $0x1c0] sm:$0xff]
    %v430 = vld [vmem:[#allocation4 + $0x1c8] sm:$0xff]
    %v431 = vld [vmem:[#allocation4 + $0x1d0] sm:$0xff]
    %v432 = vld [vmem:[#allocation4 + $0x1d8] sm:$0xff]
    %v433 = vld [vmem:[#allocation4 + $0x1e0] sm:$0xff]
    %v434 = vld [vmem:[#allocation4 + $0x1e8] sm:$0xff]
    %v435 = vld [vmem:[#allocation4 + $0x1f0] sm:$0xff]
    %v436 = vld [vmem:[#allocation4 + $0x1f8] sm:$0xff]
    %v437 = vld [vmem:[#allocation4 + $0x200] sm:$0xff]
    %v438 = vld [vmem:[#allocation4 + $0x208] sm:$0xff]
    %v439 = vld [vmem:[#allocation4 + $0x210] sm:$0xff]
    %v440 = vld [vmem:[#allocation4 + $0x218] sm:$0xff]
    %v441 = vld [vmem:[#allocation4 + $0x220] sm:$0xff]
    %v442 = vld [vmem:[#allocation4 + $0x228] sm:$0xff]
    %v443 = vld [vmem:[#allocation4 + $0x230] sm:$0xff]
    %v444 = vld [vmem:[#allocation4 + $0x238] sm:$0xff]
    %v445 = vld [vmem:[#allocation4 + $0x240] sm:$0xff]
    %v446 = vld [vmem:[#allocation4 + $0x248] sm:$0xff]
    %v447 = vld [vmem:[#allocation4 + $0x250] sm:$0xff]
    %v448 = vld [vmem:[#allocation4 + $0x258] sm:$0xff]
    %v449 = vld [vmem:[#allocation4 + $0x260] sm:$0xff]
    %v450 = vld [vmem:[#allocation4 + $0x268] sm:$0xff]
    %v451 = vld [vmem:[#allocation4 + $0x270] sm:$0xff]
    %v452 = vld [vmem:[#allocation4 + $0x278] sm:$0xff]
    %v453 = vld [vmem:[#allocation4 + $0x280] sm:$0xff]
    %v454 = vld [vmem:[#allocation4 + $0x288] sm:$0xff]
    %v455 = vld [vmem:[#allocation4 + $0x290] sm:$0xff]
    %v456 = vld [vmem:[#allocation4 + $0x298] sm:$0xff]
    %v457 = vld [vmem:[#allocation4 + $0x2a0] sm:$0xff]
    %v458 = vld [vmem:[#allocation4 + $0x2a8] sm:$0xff]
    %v459 = vld [vmem:[#allocation4 + $0x2b0] sm:$0xff]
    %v460 = vld [vmem:[#allocation4 + $0x2b8] sm:$0xff]
    %v461 = vld [vmem:[#allocation4 + $0x2c0] sm:$0xff]
    %v462 = vld [vmem:[#allocation4 + $0x2c8] sm:$0xff]
    %v463 = vld [vmem:[#allocation4 + $0x2d0] sm:$0xff]
    %v464 = vld [vmem:[#allocation4 + $0x2d8] sm:$0xff]
    %v465 = vld [vmem:[#allocation4 + $0x2e0] sm:$0xff]
    %v466 = vld [vmem:[#allocation4 + $0x2e8] sm:$0xff]
    %v467 = vld [vmem:[#allocation4 + $0x2f0] sm:$0xff]
    %v468 = vld [vmem:[#allocation4 + $0x2f8] sm:$0xff]
    %v469 = vld [vmem:[#allocation4 + $0x300] sm:$0xff]
    %v470 = vld [vmem:[#allocation4 + $0x308] sm:$0xff]
    %v471 = vld [vmem:[#allocation4 + $0x310] sm:$0xff]
    %v472 = vld [vmem:[#allocation4 + $0x318] sm:$0xff]
    %v473 = vld [vmem:[#allocation4 + $0x320] sm:$0xff]
    %v474 = vld [vmem:[#allocation4 + $0x328] sm:$0xff]
    %v475 = vld [vmem:[#allocation4 + $0x330] sm:$0xff]
    %v476 = vld [vmem:[#allocation4 + $0x338] sm:$0xff]
    %v477 = vld [vmem:[#allocation4 + $0x340] sm:$0xff]
    %v478 = vld [vmem:[#allocation4 + $0x348] sm:$0xff]
    %v479 = vld [vmem:[#allocation4 + $0x350] sm:$0xff]
    %v480 = vld [vmem:[#allocation4 + $0x358] sm:$0xff]
    %v481 = vld [vmem:[#allocation4 + $0x360] sm:$0xff]
    %v482 = vld [vmem:[#allocation4 + $0x368] sm:$0xff]
    %v483 = vld [vmem:[#allocation4 + $0x370] sm:$0xff]
    %v484 = vld [vmem:[#allocation4 + $0x378] sm:$0xff]
    %v485 = vld [vmem:[#allocation4 + $0x380] sm:$0xff]
    %v486 = vld [vmem:[#allocation4 + $0x388] sm:$0xff]
    %v487 = vld [vmem:[#allocation4 + $0x390] sm:$0xff]
    %v488 = vld [vmem:[#allocation4 + $0x398] sm:$0xff]
    %v489 = vld [vmem:[#allocation4 + $0x3a0] sm:$0xff]
    %v490 = vld [vmem:[#allocation4 + $0x3a8] sm:$0xff]
    %v491 = vld [vmem:[#allocation4 + $0x3b0] sm:$0xff]
    %v492 = vld [vmem:[#allocation4 + $0x3b8] sm:$0xff]
    %v493 = vld [vmem:[#allocation4 + $0x3c0] sm:$0xff]
    %v494 = vld [vmem:[#allocation4 + $0x3c8] sm:$0xff]
    %v495 = vld [vmem:[#allocation4 + $0x3d0] sm:$0xff]
    %v496 = vld [vmem:[#allocation4 + $0x3d8] sm:$0xff]
    %v497 = vld [vmem:[#allocation4 + $0x3e0] sm:$0xff]
    %v498 = vld [vmem:[#allocation4 + $0x3e8] sm:$0xff]
    %v499 = vld [vmem:[#allocation4 + $0x3f0] sm:$0xff]
    %v500 = vld [vmem:[#allocation4 + $0x3f8] sm:$0xff]
    %v501 = vld [vmem:[%s4] sm:$0xf]
    %v503 = vlaneseq
    %v504 = vshrl.u32 %v503, 7
    %v505 = vsub.s32 0, %v504
    %v506 = vrot.slane %v501, %v505
    %v507 = vlaneseq
    %v508 = vshrl.u32 %v507, 7
    %v509 = vsub.s32 1, %v508
    %v510 = vrot.slane %v501, %v509
    %v511 = vlaneseq
    %v512 = vshrl.u32 %v511, 7
    %v513 = vsub.s32 2, %v512
    %v514 = vrot.slane %v501, %v513
    %v515 = vlaneseq
    %v516 = vshrl.u32 %v515, 7
    %v517 = vsub.s32 3, %v516
    %v518 = vrot.slane %v501, %v517
    %v651 = vunpack.c.l.b16 %v373
    %v652 = vunpack.c.h.b16 %v373
    %v653 = vunpack.c.l.b16 %v374
    %v654 = vunpack.c.h.b16 %v374
    %v655 = vunpack.c.l.b16 %v375
    %v656 = vunpack.c.h.b16 %v375
    %v657 = vunpack.c.l.b16 %v376
    %v658 = vunpack.c.h.b16 %v376
    %v659 = vunpack.c.l.b16 %v377
    %v660 = vunpack.c.h.b16 %v377
    %v661 = vunpack.c.l.b16 %v378
    %v662 = vunpack.c.h.b16 %v378
    %v663 = vunpack.c.l.b16 %v379
    %v664 = vunpack.c.h.b16 %v379
    %v665 = vunpack.c.l.b16 %v380
    %v666 = vunpack.c.h.b16 %v380
    %v667 = vunpack.c.l.b16 %v381
    %v668 = vunpack.c.h.b16 %v381
    %v669 = vunpack.c.l.b16 %v382
    %v670 = vunpack.c.h.b16 %v382
    %v671 = vunpack.c.l.b16 %v383
    %v672 = vunpack.c.h.b16 %v383
    %v673 = vunpack.c.l.b16 %v384
    %v674 = vunpack.c.h.b16 %v384
    %v675 = vunpack.c.l.b16 %v385
    %v676 = vunpack.c.h.b16 %v385
    %v677 = vunpack.c.l.b16 %v386
    %v678 = vunpack.c.h.b16 %v386
    %v679 = vunpack.c.l.b16 %v387
    %v680 = vunpack.c.h.b16 %v387
    %v681 = vunpack.c.l.b16 %v388
    %v682 = vunpack.c.h.b16 %v388
    %v683 = vunpack.c.l.b16 %v389
    %v684 = vunpack.c.h.b16 %v389
    %v685 = vunpack.c.l.b16 %v390
    %v686 = vunpack.c.h.b16 %v390
    %v687 = vunpack.c.l.b16 %v391
    %v688 = vunpack.c.h.b16 %v391
    %v689 = vunpack.c.l.b16 %v392
    %v690 = vunpack.c.h.b16 %v392
    %v691 = vunpack.c.l.b16 %v393
    %v692 = vunpack.c.h.b16 %v393
    %v693 = vunpack.c.l.b16 %v394
    %v694 = vunpack.c.h.b16 %v394
    %v695 = vunpack.c.l.b16 %v395
    %v696 = vunpack.c.h.b16 %v395
    %v697 = vunpack.c.l.b16 %v396
    %v698 = vunpack.c.h.b16 %v396
    %v699 = vunpack.c.l.b16 %v397
    %v700 = vunpack.c.h.b16 %v397
    %v701 = vunpack.c.l.b16 %v398
    %v702 = vunpack.c.h.b16 %v398
    %v703 = vunpack.c.l.b16 %v399
    %v704 = vunpack.c.h.b16 %v399
    %v705 = vunpack.c.l.b16 %v400
    %v706 = vunpack.c.h.b16 %v400
    %v707 = vunpack.c.l.b16 %v401
    %v708 = vunpack.c.h.b16 %v401
    %v709 = vunpack.c.l.b16 %v402
    %v710 = vunpack.c.h.b16 %v402
    %v711 = vunpack.c.l.b16 %v403
    %v712 = vunpack.c.h.b16 %v403
    %v713 = vunpack.c.l.b16 %v404
    %v714 = vunpack.c.h.b16 %v404
    %v715 = vunpack.c.l.b16 %v405
    %v716 = vunpack.c.h.b16 %v405
    %v717 = vunpack.c.l.b16 %v406
    %v718 = vunpack.c.h.b16 %v406
    %v719 = vunpack.c.l.b16 %v407
    %v720 = vunpack.c.h.b16 %v407
    %v721 = vunpack.c.l.b16 %v408
    %v722 = vunpack.c.h.b16 %v408
    %v723 = vunpack.c.l.b16 %v409
    %v724 = vunpack.c.h.b16 %v409
    %v725 = vunpack.c.l.b16 %v410
    %v726 = vunpack.c.h.b16 %v410
    %v727 = vunpack.c.l.b16 %v411
    %v728 = vunpack.c.h.b16 %v411
    %v729 = vunpack.c.l.b16 %v412
    %v730 = vunpack.c.h.b16 %v412
    %v731 = vunpack.c.l.b16 %v413
    %v732 = vunpack.c.h.b16 %v413
    %v733 = vunpack.c.l.b16 %v414
    %v734 = vunpack.c.h.b16 %v414
    %v735 = vunpack.c.l.b16 %v415
    %v736 = vunpack.c.h.b16 %v415
    %v737 = vunpack.c.l.b16 %v416
    %v738 = vunpack.c.h.b16 %v416
    %v739 = vunpack.c.l.b16 %v417
    %v740 = vunpack.c.h.b16 %v417
    %v741 = vunpack.c.l.b16 %v418
    %v742 = vunpack.c.h.b16 %v418
    %v743 = vunpack.c.l.b16 %v419
    %v744 = vunpack.c.h.b16 %v419
    %v745 = vunpack.c.l.b16 %v420
    %v746 = vunpack.c.h.b16 %v420
    %v747 = vunpack.c.l.b16 %v421
    %v748 = vunpack.c.h.b16 %v421
    %v749 = vunpack.c.l.b16 %v422
    %v750 = vunpack.c.h.b16 %v422
    %v751 = vunpack.c.l.b16 %v423
    %v752 = vunpack.c.h.b16 %v423
    %v753 = vunpack.c.l.b16 %v424
    %v754 = vunpack.c.h.b16 %v424
    %v755 = vunpack.c.l.b16 %v425
    %v756 = vunpack.c.h.b16 %v425
    %v757 = vunpack.c.l.b16 %v426
    %v758 = vunpack.c.h.b16 %v426
    %v759 = vunpack.c.l.b16 %v427
    %v760 = vunpack.c.h.b16 %v427
    %v761 = vunpack.c.l.b16 %v428
    %v762 = vunpack.c.h.b16 %v428
    %v763 = vunpack.c.l.b16 %v429
    %v764 = vunpack.c.h.b16 %v429
    %v765 = vunpack.c.l.b16 %v430
    %v766 = vunpack.c.h.b16 %v430
    %v767 = vunpack.c.l.b16 %v431
    %v768 = vunpack.c.h.b16 %v431
    %v769 = vunpack.c.l.b16 %v432
    %v770 = vunpack.c.h.b16 %v432
    %v771 = vunpack.c.l.b16 %v433
    %v772 = vunpack.c.h.b16 %v433
    %v773 = vunpack.c.l.b16 %v434
    %v774 = vunpack.c.h.b16 %v434
    %v775 = vunpack.c.l.b16 %v435
    %v776 = vunpack.c.h.b16 %v435
    %v777 = vunpack.c.l.b16 %v436
    %v778 = vunpack.c.h.b16 %v436
    %v779 = vunpack.c.l.b16 %v437
    %v780 = vunpack.c.h.b16 %v437
    %v781 = vunpack.c.l.b16 %v438
    %v782 = vunpack.c.h.b16 %v438
    %v783 = vunpack.c.l.b16 %v439
    %v784 = vunpack.c.h.b16 %v439
    %v785 = vunpack.c.l.b16 %v440
    %v786 = vunpack.c.h.b16 %v440
    %v787 = vunpack.c.l.b16 %v441
    %v788 = vunpack.c.h.b16 %v441
    %v789 = vunpack.c.l.b16 %v442
    %v790 = vunpack.c.h.b16 %v442
    %v791 = vunpack.c.l.b16 %v443
    %v792 = vunpack.c.h.b16 %v443
    %v793 = vunpack.c.l.b16 %v444
    %v794 = vunpack.c.h.b16 %v444
    %v795 = vunpack.c.l.b16 %v445
    %v796 = vunpack.c.h.b16 %v445
    %v797 = vunpack.c.l.b16 %v446
    %v798 = vunpack.c.h.b16 %v446
    %v799 = vunpack.c.l.b16 %v447
    %v800 = vunpack.c.h.b16 %v447
    %v801 = vunpack.c.l.b16 %v448
    %v802 = vunpack.c.h.b16 %v448
    %v803 = vunpack.c.l.b16 %v449
    %v804 = vunpack.c.h.b16 %v449
    %v805 = vunpack.c.l.b16 %v450
    %v806 = vunpack.c.h.b16 %v450
    %v807 = vunpack.c.l.b16 %v451
    %v808 = vunpack.c.h.b16 %v451
    %v809 = vunpack.c.l.b16 %v452
    %v810 = vunpack.c.h.b16 %v452
    %v811 = vunpack.c.l.b16 %v453
    %v812 = vunpack.c.h.b16 %v453
    %v813 = vunpack.c.l.b16 %v454
    %v814 = vunpack.c.h.b16 %v454
    %v815 = vunpack.c.l.b16 %v455
    %v816 = vunpack.c.h.b16 %v455
    %v817 = vunpack.c.l.b16 %v456
    %v818 = vunpack.c.h.b16 %v456
    %v819 = vunpack.c.l.b16 %v457
    %v820 = vunpack.c.h.b16 %v457
    %v821 = vunpack.c.l.b16 %v458
    %v822 = vunpack.c.h.b16 %v458
    %v823 = vunpack.c.l.b16 %v459
    %v824 = vunpack.c.h.b16 %v459
    %v825 = vunpack.c.l.b16 %v460
    %v826 = vunpack.c.h.b16 %v460
    %v827 = vunpack.c.l.b16 %v461
    %v828 = vunpack.c.h.b16 %v461
    %v829 = vunpack.c.l.b16 %v462
    %v830 = vunpack.c.h.b16 %v462
    %v831 = vunpack.c.l.b16 %v463
    %v832 = vunpack.c.h.b16 %v463
    %v833 = vunpack.c.l.b16 %v464
    %v834 = vunpack.c.h.b16 %v464
    %v835 = vunpack.c.l.b16 %v465
    %v836 = vunpack.c.h.b16 %v465
    %v837 = vunpack.c.l.b16 %v466
    %v838 = vunpack.c.h.b16 %v466
    %v839 = vunpack.c.l.b16 %v467
    %v840 = vunpack.c.h.b16 %v467
    %v841 = vunpack.c.l.b16 %v468
    %v842 = vunpack.c.h.b16 %v468
    %v843 = vunpack.c.l.b16 %v469
    %v844 = vunpack.c.h.b16 %v469
    %v845 = vunpack.c.l.b16 %v470
    %v846 = vunpack.c.h.b16 %v470
    %v847 = vunpack.c.l.b16 %v471
    %v848 = vunpack.c.h.b16 %v471
    %v849 = vunpack.c.l.b16 %v472
    %v850 = vunpack.c.h.b16 %v472
    %v851 = vunpack.c.l.b16 %v473
    %v852 = vunpack.c.h.b16 %v473
    %v853 = vunpack.c.l.b16 %v474
    %v854 = vunpack.c.h.b16 %v474
    %v855 = vunpack.c.l.b16 %v475
    %v856 = vunpack.c.h.b16 %v475
    %v857 = vunpack.c.l.b16 %v476
    %v858 = vunpack.c.h.b16 %v476
    %v859 = vunpack.c.l.b16 %v477
    %v860 = vunpack.c.h.b16 %v477
    %v861 = vunpack.c.l.b16 %v478
    %v862 = vunpack.c.h.b16 %v478
    %v863 = vunpack.c.l.b16 %v479
    %v864 = vunpack.c.h.b16 %v479
    %v865 = vunpack.c.l.b16 %v480
    %v866 = vunpack.c.h.b16 %v480
    %v867 = vunpack.c.l.b16 %v481
    %v868 = vunpack.c.h.b16 %v481
    %v869 = vunpack.c.l.b16 %v482
    %v870 = vunpack.c.h.b16 %v482
    %v871 = vunpack.c.l.b16 %v483
    %v872 = vunpack.c.h.b16 %v483
    %v873 = vunpack.c.l.b16 %v484
    %v874 = vunpack.c.h.b16 %v484
    %v875 = vunpack.c.l.b16 %v485
    %v876 = vunpack.c.h.b16 %v485
    %v877 = vunpack.c.l.b16 %v486
    %v878 = vunpack.c.h.b16 %v486
    %v879 = vunpack.c.l.b16 %v487
    %v880 = vunpack.c.h.b16 %v487
    %v881 = vunpack.c.l.b16 %v488
    %v882 = vunpack.c.h.b16 %v488
    %v883 = vunpack.c.l.b16 %v489
    %v884 = vunpack.c.h.b16 %v489
    %v885 = vunpack.c.l.b16 %v490
    %v886 = vunpack.c.h.b16 %v490
    %v887 = vunpack.c.l.b16 %v491
    %v888 = vunpack.c.h.b16 %v491
    %v889 = vunpack.c.l.b16 %v492
    %v890 = vunpack.c.h.b16 %v492
    %v891 = vunpack.c.l.b16 %v493
    %v892 = vunpack.c.h.b16 %v493
    %v893 = vunpack.c.l.b16 %v494
    %v894 = vunpack.c.h.b16 %v494
    %v895 = vunpack.c.l.b16 %v495
    %v896 = vunpack.c.h.b16 %v495
    %v897 = vunpack.c.l.b16 %v496
    %v898 = vunpack.c.h.b16 %v496
    %v899 = vunpack.c.l.b16 %v497
    %v900 = vunpack.c.h.b16 %v497
    %v901 = vunpack.c.l.b16 %v498
    %v902 = vunpack.c.h.b16 %v498
    %v903 = vunpack.c.l.b16 %v499
    %v904 = vunpack.c.h.b16 %v499
    %v905 = vunpack.c.l.b16 %v500
    %v906 = vunpack.c.h.b16 %v500
    %v907 = vpack.c.b16 %v655, %v651
    %v908 = vpack.c.b16 %v656, %v652
    %v909 = vpack.c.b16 %v657, %v653
    %v910 = vpack.c.b16 %v658, %v654
    %v911 = vpack.c.b16 %v663, %v659
    %v912 = vpack.c.b16 %v664, %v660
    %v913 = vpack.c.b16 %v665, %v661
    %v914 = vpack.c.b16 %v666, %v662
    %v915 = vpack.c.b16 %v671, %v667
    %v916 = vpack.c.b16 %v672, %v668
    %v917 = vpack.c.b16 %v673, %v669
    %v918 = vpack.c.b16 %v674, %v670
    %v919 = vpack.c.b16 %v679, %v675
    %v920 = vpack.c.b16 %v680, %v676
    %v921 = vpack.c.b16 %v681, %v677
    %v922 = vpack.c.b16 %v682, %v678
    %v923 = vpack.c.b16 %v687, %v683
    %v924 = vpack.c.b16 %v688, %v684
    %v925 = vpack.c.b16 %v689, %v685
    %v926 = vpack.c.b16 %v690, %v686
    %v927 = vpack.c.b16 %v695, %v691
    %v928 = vpack.c.b16 %v696, %v692
    %v929 = vpack.c.b16 %v697, %v693
    %v930 = vpack.c.b16 %v698, %v694
    %v931 = vpack.c.b16 %v703, %v699
    %v932 = vpack.c.b16 %v704, %v700
    %v933 = vpack.c.b16 %v705, %v701
    %v934 = vpack.c.b16 %v706, %v702
    %v935 = vpack.c.b16 %v711, %v707
    %v936 = vpack.c.b16 %v712, %v708
    %v937 = vpack.c.b16 %v713, %v709
    %v938 = vpack.c.b16 %v714, %v710
    %v939 = vpack.c.b16 %v719, %v715
    %v940 = vpack.c.b16 %v720, %v716
    %v941 = vpack.c.b16 %v721, %v717
    %v942 = vpack.c.b16 %v722, %v718
    %v943 = vpack.c.b16 %v727, %v723
    %v944 = vpack.c.b16 %v728, %v724
    %v945 = vpack.c.b16 %v729, %v725
    %v946 = vpack.c.b16 %v730, %v726
    %v947 = vpack.c.b16 %v735, %v731
    %v948 = vpack.c.b16 %v736, %v732
    %v949 = vpack.c.b16 %v737, %v733
    %v950 = vpack.c.b16 %v738, %v734
    %v951 = vpack.c.b16 %v743, %v739
    %v952 = vpack.c.b16 %v744, %v740
    %v953 = vpack.c.b16 %v745, %v741
    %v954 = vpack.c.b16 %v746, %v742
    %v955 = vpack.c.b16 %v751, %v747
    %v956 = vpack.c.b16 %v752, %v748
    %v957 = vpack.c.b16 %v753, %v749
    %v958 = vpack.c.b16 %v754, %v750
    %v959 = vpack.c.b16 %v759, %v755
    %v960 = vpack.c.b16 %v760, %v756
    %v961 = vpack.c.b16 %v761, %v757
    %v962 = vpack.c.b16 %v762, %v758
    %v963 = vpack.c.b16 %v767, %v763
    %v964 = vpack.c.b16 %v768, %v764
    %v965 = vpack.c.b16 %v769, %v765
    %v966 = vpack.c.b16 %v770, %v766
    %v967 = vpack.c.b16 %v775, %v771
    %v968 = vpack.c.b16 %v776, %v772
    %v969 = vpack.c.b16 %v777, %v773
    %v970 = vpack.c.b16 %v778, %v774
    %v971 = vpack.c.b16 %v783, %v779
    %v972 = vpack.c.b16 %v784, %v780
    %v973 = vpack.c.b16 %v785, %v781
    %v974 = vpack.c.b16 %v786, %v782
    %v975 = vpack.c.b16 %v791, %v787
    %v976 = vpack.c.b16 %v792, %v788
    %v977 = vpack.c.b16 %v793, %v789
    %v978 = vpack.c.b16 %v794, %v790
    %v979 = vpack.c.b16 %v799, %v795
    %v980 = vpack.c.b16 %v800, %v796
    %v981 = vpack.c.b16 %v801, %v797
    %v982 = vpack.c.b16 %v802, %v798
    %v983 = vpack.c.b16 %v807, %v803
    %v984 = vpack.c.b16 %v808, %v804
    %v985 = vpack.c.b16 %v809, %v805
    %v986 = vpack.c.b16 %v810, %v806
    %v987 = vpack.c.b16 %v815, %v811
    %v988 = vpack.c.b16 %v816, %v812
    %v989 = vpack.c.b16 %v817, %v813
    %v990 = vpack.c.b16 %v818, %v814
    %v991 = vpack.c.b16 %v823, %v819
    %v992 = vpack.c.b16 %v824, %v820
    %v993 = vpack.c.b16 %v825, %v821
    %v994 = vpack.c.b16 %v826, %v822
    %v995 = vpack.c.b16 %v831, %v827
    %v996 = vpack.c.b16 %v832, %v828
    %v997 = vpack.c.b16 %v833, %v829
    %v998 = vpack.c.b16 %v834, %v830
    %v999 = vpack.c.b16 %v839, %v835
    %v1000 = vpack.c.b16 %v840, %v836
    %v1001 = vpack.c.b16 %v841, %v837
    %v1002 = vpack.c.b16 %v842, %v838
    %v1003 = vpack.c.b16 %v847, %v843
    %v1004 = vpack.c.b16 %v848, %v844
    %v1005 = vpack.c.b16 %v849, %v845
    %v1006 = vpack.c.b16 %v850, %v846
    %v1007 = vpack.c.b16 %v855, %v851
    %v1008 = vpack.c.b16 %v856, %v852
    %v1009 = vpack.c.b16 %v857, %v853
    %v1010 = vpack.c.b16 %v858, %v854
    %v1011 = vpack.c.b16 %v863, %v859
    %v1012 = vpack.c.b16 %v864, %v860
    %v1013 = vpack.c.b16 %v865, %v861
    %v1014 = vpack.c.b16 %v866, %v862
    %v1015 = vpack.c.b16 %v871, %v867
    %v1016 = vpack.c.b16 %v872, %v868
    %v1017 = vpack.c.b16 %v873, %v869
    %v1018 = vpack.c.b16 %v874, %v870
    %v1019 = vpack.c.b16 %v879, %v875
    %v1020 = vpack.c.b16 %v880, %v876
    %v1021 = vpack.c.b16 %v881, %v877
    %v1022 = vpack.c.b16 %v882, %v878
    %v1023 = vpack.c.b16 %v887, %v883
    %v1024 = vpack.c.b16 %v888, %v884
    %v1025 = vpack.c.b16 %v889, %v885
    %v1026 = vpack.c.b16 %v890, %v886
    %v1027 = vpack.c.b16 %v895, %v891
    %v1028 = vpack.c.b16 %v896, %v892
    %v1029 = vpack.c.b16 %v897, %v893
    %v1030 = vpack.c.b16 %v898, %v894
    %v1031 = vpack.c.b16 %v903, %v899
    %v1032 = vpack.c.b16 %v904, %v900
    %v1033 = vpack.c.b16 %v905, %v901
    %v1034 = vpack.c.b16 %v906, %v902
    %1163 = vmatprep.subr.bf16.mxu0 %v936
    %1164 = vmatpush1.bf16.msra.mxu0 %v935
    %1165 = vmatprep.subr.bf16.mxu0 %v932
    %1166 = vmatpush1.bf16.msra.mxu0 %v931
    %1167 = vmatprep.subr.bf16.mxu0 %v928
    %1168 = vmatpush1.bf16.msra.mxu0 %v927
    %1169 = vmatprep.subr.bf16.mxu0 %v924
    %1170 = vmatpush1.bf16.msra.mxu0 %v923
    %1171 = vmatprep.subr.bf16.mxu0 %v920
    %1172 = vmatpush1.bf16.msra.mxu0 %v919
    %1173 = vmatprep.subr.bf16.mxu0 %v916
    %1174 = vmatpush1.bf16.msra.mxu0 %v915
    %1175 = vmatprep.subr.bf16.mxu0 %v912
    %1176 = vmatpush1.bf16.msra.mxu0 %v911
    %1177 = vmatprep.subr.bf16.mxu0 %v908
    %1178 = vmatpush1.bf16.msra.mxu0 %v907
    %1179 = vmatprep.subr.bf16.mxu0 %v968
    %1180 = vmatpush2.bf16.msra.mxu0 %v967
    %1181 = vmatprep.subr.bf16.mxu0 %v964
    %1182 = vmatpush2.bf16.msra.mxu0 %v963
    %1183 = vmatprep.subr.bf16.mxu0 %v960
    %1184 = vmatpush2.bf16.msra.mxu0 %v959
    %1185 = vmatprep.subr.bf16.mxu0 %v956
    %1186 = vmatpush2.bf16.msra.mxu0 %v955
    %1187 = vmatprep.subr.bf16.mxu0 %v952
    %1188 = vmatpush2.bf16.msra.mxu0 %v951
    %1189 = vmatprep.subr.bf16.mxu0 %v948
    %1190 = vmatpush2.bf16.msra.mxu0 %v947
    %1191 = vmatprep.subr.bf16.mxu0 %v944
    %1192 = vmatpush2.bf16.msra.mxu0 %v943
    %1193 = vmatprep.subr.bf16.mxu0 %v940
    %1194 = vmatpush2.bf16.msra.mxu0 %v939
    %1195 = vmatprep.mubr.bf16.mxu0 %v366
    %1196 = vmatmul.mubr.bf16.gmra.mxu0 %v365
    %v1197 = vpop.f32.mrf.mxu0
    %v1198 = vadd.f32 %v506, %v1197
    %v1199 = vpop.f32.mrf.mxu0
    %v1200 = vadd.f32 %v510, %v1199
    %v1201 = vpop.f32.mrf.mxu0
    %v1202 = vadd.f32 %v506, %v1201
    %v1203 = vpop.f32.mrf.mxu0
    %v1204 = vadd.f32 %v510, %v1203
    %1205 = vdwg.mxu0
    %1206 = vmatprep.subr.bf16.mxu0 %v1000
    %1207 = vmatpush1.bf16.msra.mxu0 %v999
    %1208 = vmatprep.subr.bf16.mxu0 %v996
    %1209 = vmatpush1.bf16.msra.mxu0 %v995
    %1210 = vmatprep.subr.bf16.mxu0 %v992
    %1211 = vmatpush1.bf16.msra.mxu0 %v991
    %1212 = vmatprep.subr.bf16.mxu0 %v988
    %1213 = vmatpush1.bf16.msra.mxu0 %v987
    %1214 = vmatprep.subr.bf16.mxu0 %v984
    %1215 = vmatpush1.bf16.msra.mxu0 %v983
    %1216 = vmatprep.subr.bf16.mxu0 %v980
    %1217 = vmatpush1.bf16.msra.mxu0 %v979
    %1218 = vmatprep.subr.bf16.mxu0 %v976
    %1219 = vmatpush1.bf16.msra.mxu0 %v975
    %1220 = vmatprep.subr.bf16.mxu0 %v972
    %1221 = vmatpush1.bf16.msra.mxu0 %v971
    %1222 = vmatprep.subr.bf16.mxu0 %v1032
    %1223 = vmatpush2.bf16.msra.mxu0 %v1031
    %1224 = vmatprep.subr.bf16.mxu0 %v1028
    %1225 = vmatpush2.bf16.msra.mxu0 %v1027
    %1226 = vmatprep.subr.bf16.mxu0 %v1024
    %1227 = vmatpush2.bf16.msra.mxu0 %v1023
    %1228 = vmatprep.subr.bf16.mxu0 %v1020
    %1229 = vmatpush2.bf16.msra.mxu0 %v1019
    %1230 = vmatprep.subr.bf16.mxu0 %v1016
    %1231 = vmatpush2.bf16.msra.mxu0 %v1015
    %1232 = vmatprep.subr.bf16.mxu0 %v1012
    %1233 = vmatpush2.bf16.msra.mxu0 %v1011
    %1234 = vmatprep.subr.bf16.mxu0 %v1008
    %1235 = vmatpush2.bf16.msra.mxu0 %v1007
    %1236 = vmatprep.subr.bf16.mxu0 %v1004
    %1237 = vmatpush2.bf16.msra.mxu0 %v1003
    %1238 = vmatprep.mubr.bf16.mxu0 %v368
    %1239 = vmatmul.mubr.bf16.gmra.mxu0 %v367
    %v1240 = vpop.f32.mrf.mxu0
    %v1241 = vadd.f32 %v1198, %v1240
    %v1242 = vpop.f32.mrf.mxu0
    %v1243 = vadd.f32 %v1200, %v1242
    %v1244 = vpop.f32.mrf.mxu0
    %v1245 = vadd.f32 %v1202, %v1244
    %v1246 = vpop.f32.mrf.mxu0
    %v1247 = vadd.f32 %v1204, %v1246
    %1248 = vdwg.mxu0
    %1249 = vmatprep.subr.bf16.mxu0 %v938
    %1250 = vmatpush1.bf16.msra.mxu0 %v937
    %1251 = vmatprep.subr.bf16.mxu0 %v934
    %1252 = vmatpush1.bf16.msra.mxu0 %v933
    %1253 = vmatprep.subr.bf16.mxu0 %v930
    %1254 = vmatpush1.bf16.msra.mxu0 %v929
    %1255 = vmatprep.subr.bf16.mxu0 %v926
    %1256 = vmatpush1.bf16.msra.mxu0 %v925
    %1257 = vmatprep.subr.bf16.mxu0 %v922
    %1258 = vmatpush1.bf16.msra.mxu0 %v921
    %1259 = vmatprep.subr.bf16.mxu0 %v918
    %1260 = vmatpush1.bf16.msra.mxu0 %v917
    %1261 = vmatprep.subr.bf16.mxu0 %v914
    %1262 = vmatpush1.bf16.msra.mxu0 %v913
    %1263 = vmatprep.subr.bf16.mxu0 %v910
    %1264 = vmatpush1.bf16.msra.mxu0 %v909
    %1265 = vmatprep.subr.bf16.mxu0 %v970
    %1266 = vmatpush2.bf16.msra.mxu0 %v969
    %1267 = vmatprep.subr.bf16.mxu0 %v966
    %1268 = vmatpush2.bf16.msra.mxu0 %v965
    %1269 = vmatprep.subr.bf16.mxu0 %v962
    %1270 = vmatpush2.bf16.msra.mxu0 %v961
    %1271 = vmatprep.subr.bf16.mxu0 %v958
    %1272 = vmatpush2.bf16.msra.mxu0 %v957
    %1273 = vmatprep.subr.bf16.mxu0 %v954
    %1274 = vmatpush2.bf16.msra.mxu0 %v953
    %1275 = vmatprep.subr.bf16.mxu0 %v950
    %1276 = vmatpush2.bf16.msra.mxu0 %v949
    %1277 = vmatprep.subr.bf16.mxu0 %v946
    %1278 = vmatpush2.bf16.msra.mxu0 %v945
    %1279 = vmatprep.subr.bf16.mxu0 %v942
    %1280 = vmatpush2.bf16.msra.mxu0 %v941
    %1281 = vmatprep.mubr.bf16.mxu0 %v366
    %1282 = vmatmul.mubr.bf16.gmra.mxu0 %v365
    %v1283 = vpop.f32.mrf.mxu0
    %v1284 = vadd.f32 %v514, %v1283
    %v1285 = vpop.f32.mrf.mxu0
    %v1286 = vadd.f32 %v518, %v1285
    %v1287 = vpop.f32.mrf.mxu0
    %v1288 = vadd.f32 %v514, %v1287
    %v1289 = vpop.f32.mrf.mxu0
    %v1290 = vadd.f32 %v518, %v1289
    %1291 = vdwg.mxu0
    %1292 = vmatprep.subr.bf16.mxu0 %v1002
    %1293 = vmatpush1.bf16.msra.mxu0 %v1001
    %1294 = vmatprep.subr.bf16.mxu0 %v998
    %1295 = vmatpush1.bf16.msra.mxu0 %v997
    %1296 = vmatprep.subr.bf16.mxu0 %v994
    %1297 = vmatpush1.bf16.msra.mxu0 %v993
    %1298 = vmatprep.subr.bf16.mxu0 %v990
    %1299 = vmatpush1.bf16.msra.mxu0 %v989
    %1300 = vmatprep.subr.bf16.mxu0 %v986
    %1301 = vmatpush1.bf16.msra.mxu0 %v985
    %1302 = vmatprep.subr.bf16.mxu0 %v982
    %1303 = vmatpush1.bf16.msra.mxu0 %v981
    %1304 = vmatprep.subr.bf16.mxu0 %v978
    %1305 = vmatpush1.bf16.msra.mxu0 %v977
    %1306 = vmatprep.subr.bf16.mxu0 %v974
    %1307 = vmatpush1.bf16.msra.mxu0 %v973
    %1308 = vmatprep.subr.bf16.mxu0 %v1034
    %1309 = vmatpush2.bf16.msra.mxu0 %v1033
    %1310 = vmatprep.subr.bf16.mxu0 %v1030
    %1311 = vmatpush2.bf16.msra.mxu0 %v1029
    %1312 = vmatprep.subr.bf16.mxu0 %v1026
    %1313 = vmatpush2.bf16.msra.mxu0 %v1025
    %1314 = vmatprep.subr.bf16.mxu0 %v1022
    %1315 = vmatpush2.bf16.msra.mxu0 %v1021
    %1316 = vmatprep.subr.bf16.mxu0 %v1018
    %1317 = vmatpush2.bf16.msra.mxu0 %v1017
    %1318 = vmatprep.subr.bf16.mxu0 %v1014
    %1319 = vmatpush2.bf16.msra.mxu0 %v1013
    %1320 = vmatprep.subr.bf16.mxu0 %v1010
    %1321 = vmatpush2.bf16.msra.mxu0 %v1009
    %1322 = vmatprep.subr.bf16.mxu0 %v1006
    %1323 = vmatpush2.bf16.msra.mxu0 %v1005
    %1324 = vmatprep.mubr.bf16.mxu0 %v368
    %1325 = vmatmul.mubr.bf16.gmra.mxu0 %v367
    %v1326 = vpop.f32.mrf.mxu0
    %v1327 = vadd.f32 %v1284, %v1326
    %v1328 = vpop.f32.mrf.mxu0
    %v1329 = vadd.f32 %v1286, %v1328
    %v1330 = vpop.f32.mrf.mxu0
    %v1331 = vadd.f32 %v1288, %v1330
    %v1332 = vpop.f32.mrf.mxu0
    %v1333 = vadd.f32 %v1290, %v1332
    %1334 = vdwg.mxu0
    %v1335 = vpack.c.bf16 %v1245, %v1241
    %v1336 = vpack.c.bf16 %v1247, %v1243
    %v1337 = vpack.c.bf16 %v1331, %v1327
    %v1338 = vpack.c.bf16 %v1333, %v1329
    %v1339 = vtanh.bf16.pop %v1335
    %v1340 = vtanh.bf16.pop %v1336
    %v1341 = vtanh.bf16.pop %v1337
    %v1342 = vtanh.bf16.pop %v1338
    %v1343 = vld [vmem:[#allocation6] sm:$0xff]
    %v1344 = vld [vmem:[#allocation6 + $0x8] sm:$0xff]
    %v1345 = vld [vmem:[#allocation6 + $0x10] sm:$0xff]
    %v1346 = vld [vmem:[#allocation6 + $0x18] sm:$0xff]
    %v1347 = vld [vmem:[#allocation6 + $0x20] sm:$0xff]
    %v1348 = vld [vmem:[#allocation6 + $0x28] sm:$0xff]
    %v1349 = vld [vmem:[#allocation6 + $0x30] sm:$0xff]
    %v1350 = vld [vmem:[#allocation6 + $0x38] sm:$0xff]
    %v1351 = vld [vmem:[#allocation6 + $0x40] sm:$0xff]
    %v1352 = vld [vmem:[#allocation6 + $0x48] sm:$0xff]
    %v1353 = vld [vmem:[#allocation6 + $0x50] sm:$0xff]
    %v1354 = vld [vmem:[#allocation6 + $0x58] sm:$0xff]
    %v1355 = vld [vmem:[#allocation6 + $0x60] sm:$0xff]
    %v1356 = vld [vmem:[#allocation6 + $0x68] sm:$0xff]
    %v1357 = vld [vmem:[#allocation6 + $0x70] sm:$0xff]
    %v1358 = vld [vmem:[#allocation6 + $0x78] sm:$0xff]
    %v1359 = vld [vmem:[#allocation6 + $0x80] sm:$0xff]
    %v1360 = vld [vmem:[#allocation6 + $0x88] sm:$0xff]
    %v1361 = vld [vmem:[#allocation6 + $0x90] sm:$0xff]
    %v1362 = vld [vmem:[#allocation6 + $0x98] sm:$0xff]
    %v1363 = vld [vmem:[#allocation6 + $0xa0] sm:$0xff]
    %v1364 = vld [vmem:[#allocation6 + $0xa8] sm:$0xff]
    %v1365 = vld [vmem:[#allocation6 + $0xb0] sm:$0xff]
    %v1366 = vld [vmem:[#allocation6 + $0xb8] sm:$0xff]
    %v1367 = vld [vmem:[#allocation6 + $0xc0] sm:$0xff]
    %v1368 = vld [vmem:[#allocation6 + $0xc8] sm:$0xff]
    %v1369 = vld [vmem:[#allocation6 + $0xd0] sm:$0xff]
    %v1370 = vld [vmem:[#allocation6 + $0xd8] sm:$0xff]
    %v1371 = vld [vmem:[#allocation6 + $0xe0] sm:$0xff]
    %v1372 = vld [vmem:[#allocation6 + $0xe8] sm:$0xff]
    %v1373 = vld [vmem:[#allocation6 + $0xf0] sm:$0xff]
    %v1374 = vld [vmem:[#allocation6 + $0xf8] sm:$0xff]
    %v1375 = vld [vmem:[#allocation6 + $0x100] sm:$0xff]
    %v1376 = vld [vmem:[#allocation6 + $0x108] sm:$0xff]
    %v1377 = vld [vmem:[#allocation6 + $0x110] sm:$0xff]
    %v1378 = vld [vmem:[#allocation6 + $0x118] sm:$0xff]
    %v1379 = vld [vmem:[#allocation6 + $0x120] sm:$0xff]
    %v1380 = vld [vmem:[#allocation6 + $0x128] sm:$0xff]
    %v1381 = vld [vmem:[#allocation6 + $0x130] sm:$0xff]
    %v1382 = vld [vmem:[#allocation6 + $0x138] sm:$0xff]
    %v1383 = vld [vmem:[#allocation6 + $0x140] sm:$0xff]
    %v1384 = vld [vmem:[#allocation6 + $0x148] sm:$0xff]
    %v1385 = vld [vmem:[#allocation6 + $0x150] sm:$0xff]
    %v1386 = vld [vmem:[#allocation6 + $0x158] sm:$0xff]
    %v1387 = vld [vmem:[#allocation6 + $0x160] sm:$0xff]
    %v1388 = vld [vmem:[#allocation6 + $0x168] sm:$0xff]
    %v1389 = vld [vmem:[#allocation6 + $0x170] sm:$0xff]
    %v1390 = vld [vmem:[#allocation6 + $0x178] sm:$0xff]
    %v1391 = vld [vmem:[#allocation6 + $0x180] sm:$0xff]
    %v1392 = vld [vmem:[#allocation6 + $0x188] sm:$0xff]
    %v1393 = vld [vmem:[#allocation6 + $0x190] sm:$0xff]
    %v1394 = vld [vmem:[#allocation6 + $0x198] sm:$0xff]
    %v1395 = vld [vmem:[#allocation6 + $0x1a0] sm:$0xff]
    %v1396 = vld [vmem:[#allocation6 + $0x1a8] sm:$0xff]
    %v1397 = vld [vmem:[#allocation6 + $0x1b0] sm:$0xff]
    %v1398 = vld [vmem:[#allocation6 + $0x1b8] sm:$0xff]
    %v1399 = vld [vmem:[#allocation6 + $0x1c0] sm:$0xff]
    %v1400 = vld [vmem:[#allocation6 + $0x1c8] sm:$0xff]
    %v1401 = vld [vmem:[#allocation6 + $0x1d0] sm:$0xff]
    %v1402 = vld [vmem:[#allocation6 + $0x1d8] sm:$0xff]
    %v1403 = vld [vmem:[#allocation6 + $0x1e0] sm:$0xff]
    %v1404 = vld [vmem:[#allocation6 + $0x1e8] sm:$0xff]
    %v1405 = vld [vmem:[#allocation6 + $0x1f0] sm:$0xff]
    %v1406 = vld [vmem:[#allocation6 + $0x1f8] sm:$0xff]
    %v1407 = vld [vmem:[#allocation6 + $0x200] sm:$0xff]
    %v1408 = vld [vmem:[#allocation6 + $0x208] sm:$0xff]
    %v1409 = vld [vmem:[#allocation6 + $0x210] sm:$0xff]
    %v1410 = vld [vmem:[#allocation6 + $0x218] sm:$0xff]
    %v1411 = vld [vmem:[#allocation6 + $0x220] sm:$0xff]
    %v1412 = vld [vmem:[#allocation6 + $0x228] sm:$0xff]
    %v1413 = vld [vmem:[#allocation6 + $0x230] sm:$0xff]
    %v1414 = vld [vmem:[#allocation6 + $0x238] sm:$0xff]
    %v1415 = vld [vmem:[#allocation6 + $0x240] sm:$0xff]
    %v1416 = vld [vmem:[#allocation6 + $0x248] sm:$0xff]
    %v1417 = vld [vmem:[#allocation6 + $0x250] sm:$0xff]
    %v1418 = vld [vmem:[#allocation6 + $0x258] sm:$0xff]
    %v1419 = vld [vmem:[#allocation6 + $0x260] sm:$0xff]
    %v1420 = vld [vmem:[#allocation6 + $0x268] sm:$0xff]
    %v1421 = vld [vmem:[#allocation6 + $0x270] sm:$0xff]
    %v1422 = vld [vmem:[#allocation6 + $0x278] sm:$0xff]
    %v1423 = vld [vmem:[#allocation6 + $0x280] sm:$0xff]
    %v1424 = vld [vmem:[#allocation6 + $0x288] sm:$0xff]
    %v1425 = vld [vmem:[#allocation6 + $0x290] sm:$0xff]
    %v1426 = vld [vmem:[#allocation6 + $0x298] sm:$0xff]
    %v1427 = vld [vmem:[#allocation6 + $0x2a0] sm:$0xff]
    %v1428 = vld [vmem:[#allocation6 + $0x2a8] sm:$0xff]
    %v1429 = vld [vmem:[#allocation6 + $0x2b0] sm:$0xff]
    %v1430 = vld [vmem:[#allocation6 + $0x2b8] sm:$0xff]
    %v1431 = vld [vmem:[#allocation6 + $0x2c0] sm:$0xff]
    %v1432 = vld [vmem:[#allocation6 + $0x2c8] sm:$0xff]
    %v1433 = vld [vmem:[#allocation6 + $0x2d0] sm:$0xff]
    %v1434 = vld [vmem:[#allocation6 + $0x2d8] sm:$0xff]
    %v1435 = vld [vmem:[#allocation6 + $0x2e0] sm:$0xff]
    %v1436 = vld [vmem:[#allocation6 + $0x2e8] sm:$0xff]
    %v1437 = vld [vmem:[#allocation6 + $0x2f0] sm:$0xff]
    %v1438 = vld [vmem:[#allocation6 + $0x2f8] sm:$0xff]
    %v1439 = vld [vmem:[#allocation6 + $0x300] sm:$0xff]
    %v1440 = vld [vmem:[#allocation6 + $0x308] sm:$0xff]
    %v1441 = vld [vmem:[#allocation6 + $0x310] sm:$0xff]
    %v1442 = vld [vmem:[#allocation6 + $0x318] sm:$0xff]
    %v1443 = vld [vmem:[#allocation6 + $0x320] sm:$0xff]
    %v1444 = vld [vmem:[#allocation6 + $0x328] sm:$0xff]
    %v1445 = vld [vmem:[#allocation6 + $0x330] sm:$0xff]
    %v1446 = vld [vmem:[#allocation6 + $0x338] sm:$0xff]
    %v1447 = vld [vmem:[#allocation6 + $0x340] sm:$0xff]
    %v1448 = vld [vmem:[#allocation6 + $0x348] sm:$0xff]
    %v1449 = vld [vmem:[#allocation6 + $0x350] sm:$0xff]
    %v1450 = vld [vmem:[#allocation6 + $0x358] sm:$0xff]
    %v1451 = vld [vmem:[#allocation6 + $0x360] sm:$0xff]
    %v1452 = vld [vmem:[#allocation6 + $0x368] sm:$0xff]
    %v1453 = vld [vmem:[#allocation6 + $0x370] sm:$0xff]
    %v1454 = vld [vmem:[#allocation6 + $0x378] sm:$0xff]
    %v1455 = vld [vmem:[#allocation6 + $0x380] sm:$0xff]
    %v1456 = vld [vmem:[#allocation6 + $0x388] sm:$0xff]
    %v1457 = vld [vmem:[#allocation6 + $0x390] sm:$0xff]
    %v1458 = vld [vmem:[#allocation6 + $0x398] sm:$0xff]
    %v1459 = vld [vmem:[#allocation6 + $0x3a0] sm:$0xff]
    %v1460 = vld [vmem:[#allocation6 + $0x3a8] sm:$0xff]
    %v1461 = vld [vmem:[#allocation6 + $0x3b0] sm:$0xff]
    %v1462 = vld [vmem:[#allocation6 + $0x3b8] sm:$0xff]
    %v1463 = vld [vmem:[#allocation6 + $0x3c0] sm:$0xff]
    %v1464 = vld [vmem:[#allocation6 + $0x3c8] sm:$0xff]
    %v1465 = vld [vmem:[#allocation6 + $0x3d0] sm:$0xff]
    %v1466 = vld [vmem:[#allocation6 + $0x3d8] sm:$0xff]
    %v1467 = vld [vmem:[#allocation6 + $0x3e0] sm:$0xff]
    %v1468 = vld [vmem:[#allocation6 + $0x3e8] sm:$0xff]
    %v1469 = vld [vmem:[#allocation6 + $0x3f0] sm:$0xff]
    %v1470 = vld [vmem:[#allocation6 + $0x3f8] sm:$0xff]
    %v1471 = vld [vmem:[%s6] sm:$0xf]
    %v1473 = vlaneseq
    %v1474 = vshrl.u32 %v1473, 7
    %v1475 = vsub.s32 0, %v1474
    %v1476 = vrot.slane %v1471, %v1475
    %v1477 = vlaneseq
    %v1478 = vshrl.u32 %v1477, 7
    %v1479 = vsub.s32 1, %v1478
    %v1480 = vrot.slane %v1471, %v1479
    %v1481 = vlaneseq
    %v1482 = vshrl.u32 %v1481, 7
    %v1483 = vsub.s32 2, %v1482
    %v1484 = vrot.slane %v1471, %v1483
    %v1485 = vlaneseq
    %v1486 = vshrl.u32 %v1485, 7
    %v1487 = vsub.s32 3, %v1486
    %v1488 = vrot.slane %v1471, %v1487
    %v1621 = vunpack.c.l.b16 %v1343
    %v1622 = vunpack.c.h.b16 %v1343
    %v1623 = vunpack.c.l.b16 %v1344
    %v1624 = vunpack.c.h.b16 %v1344
    %v1625 = vunpack.c.l.b16 %v1345
    %v1626 = vunpack.c.h.b16 %v1345
    %v1627 = vunpack.c.l.b16 %v1346
    %v1628 = vunpack.c.h.b16 %v1346
    %v1629 = vunpack.c.l.b16 %v1347
    %v1630 = vunpack.c.h.b16 %v1347
    %v1631 = vunpack.c.l.b16 %v1348
    %v1632 = vunpack.c.h.b16 %v1348
    %v1633 = vunpack.c.l.b16 %v1349
    %v1634 = vunpack.c.h.b16 %v1349
    %v1635 = vunpack.c.l.b16 %v1350
    %v1636 = vunpack.c.h.b16 %v1350
    %v1637 = vunpack.c.l.b16 %v1351
    %v1638 = vunpack.c.h.b16 %v1351
    %v1639 = vunpack.c.l.b16 %v1352
    %v1640 = vunpack.c.h.b16 %v1352
    %v1641 = vunpack.c.l.b16 %v1353
    %v1642 = vunpack.c.h.b16 %v1353
    %v1643 = vunpack.c.l.b16 %v1354
    %v1644 = vunpack.c.h.b16 %v1354
    %v1645 = vunpack.c.l.b16 %v1355
    %v1646 = vunpack.c.h.b16 %v1355
    %v1647 = vunpack.c.l.b16 %v1356
    %v1648 = vunpack.c.h.b16 %v1356
    %v1649 = vunpack.c.l.b16 %v1357
    %v1650 = vunpack.c.h.b16 %v1357
    %v1651 = vunpack.c.l.b16 %v1358
    %v1652 = vunpack.c.h.b16 %v1358
    %v1653 = vunpack.c.l.b16 %v1359
    %v1654 = vunpack.c.h.b16 %v1359
    %v1655 = vunpack.c.l.b16 %v1360
    %v1656 = vunpack.c.h.b16 %v1360
    %v1657 = vunpack.c.l.b16 %v1361
    %v1658 = vunpack.c.h.b16 %v1361
    %v1659 = vunpack.c.l.b16 %v1362
    %v1660 = vunpack.c.h.b16 %v1362
    %v1661 = vunpack.c.l.b16 %v1363
    %v1662 = vunpack.c.h.b16 %v1363
    %v1663 = vunpack.c.l.b16 %v1364
    %v1664 = vunpack.c.h.b16 %v1364
    %v1665 = vunpack.c.l.b16 %v1365
    %v1666 = vunpack.c.h.b16 %v1365
    %v1667 = vunpack.c.l.b16 %v1366
    %v1668 = vunpack.c.h.b16 %v1366
    %v1669 = vunpack.c.l.b16 %v1367
    %v1670 = vunpack.c.h.b16 %v1367
    %v1671 = vunpack.c.l.b16 %v1368
    %v1672 = vunpack.c.h.b16 %v1368
    %v1673 = vunpack.c.l.b16 %v1369
    %v1674 = vunpack.c.h.b16 %v1369
    %v1675 = vunpack.c.l.b16 %v1370
    %v1676 = vunpack.c.h.b16 %v1370
    %v1677 = vunpack.c.l.b16 %v1371
    %v1678 = vunpack.c.h.b16 %v1371
    %v1679 = vunpack.c.l.b16 %v1372
    %v1680 = vunpack.c.h.b16 %v1372
    %v1681 = vunpack.c.l.b16 %v1373
    %v1682 = vunpack.c.h.b16 %v1373
    %v1683 = vunpack.c.l.b16 %v1374
    %v1684 = vunpack.c.h.b16 %v1374
    %v1685 = vunpack.c.l.b16 %v1375
    %v1686 = vunpack.c.h.b16 %v1375
    %v1687 = vunpack.c.l.b16 %v1376
    %v1688 = vunpack.c.h.b16 %v1376
    %v1689 = vunpack.c.l.b16 %v1377
    %v1690 = vunpack.c.h.b16 %v1377
    %v1691 = vunpack.c.l.b16 %v1378
    %v1692 = vunpack.c.h.b16 %v1378
    %v1693 = vunpack.c.l.b16 %v1379
    %v1694 = vunpack.c.h.b16 %v1379
    %v1695 = vunpack.c.l.b16 %v1380
    %v1696 = vunpack.c.h.b16 %v1380
    %v1697 = vunpack.c.l.b16 %v1381
    %v1698 = vunpack.c.h.b16 %v1381
    %v1699 = vunpack.c.l.b16 %v1382
    %v1700 = vunpack.c.h.b16 %v1382
    %v1701 = vunpack.c.l.b16 %v1383
    %v1702 = vunpack.c.h.b16 %v1383
    %v1703 = vunpack.c.l.b16 %v1384
    %v1704 = vunpack.c.h.b16 %v1384
    %v1705 = vunpack.c.l.b16 %v1385
    %v1706 = vunpack.c.h.b16 %v1385
    %v1707 = vunpack.c.l.b16 %v1386
    %v1708 = vunpack.c.h.b16 %v1386
    %v1709 = vunpack.c.l.b16 %v1387
    %v1710 = vunpack.c.h.b16 %v1387
    %v1711 = vunpack.c.l.b16 %v1388
    %v1712 = vunpack.c.h.b16 %v1388
    %v1713 = vunpack.c.l.b16 %v1389
    %v1714 = vunpack.c.h.b16 %v1389
    %v1715 = vunpack.c.l.b16 %v1390
    %v1716 = vunpack.c.h.b16 %v1390
    %v1717 = vunpack.c.l.b16 %v1391
    %v1718 = vunpack.c.h.b16 %v1391
    %v1719 = vunpack.c.l.b16 %v1392
    %v1720 = vunpack.c.h.b16 %v1392
    %v1721 = vunpack.c.l.b16 %v1393
    %v1722 = vunpack.c.h.b16 %v1393
    %v1723 = vunpack.c.l.b16 %v1394
    %v1724 = vunpack.c.h.b16 %v1394
    %v1725 = vunpack.c.l.b16 %v1395
    %v1726 = vunpack.c.h.b16 %v1395
    %v1727 = vunpack.c.l.b16 %v1396
    %v1728 = vunpack.c.h.b16 %v1396
    %v1729 = vunpack.c.l.b16 %v1397
    %v1730 = vunpack.c.h.b16 %v1397
    %v1731 = vunpack.c.l.b16 %v1398
    %v1732 = vunpack.c.h.b16 %v1398
    %v1733 = vunpack.c.l.b16 %v1399
    %v1734 = vunpack.c.h.b16 %v1399
    %v1735 = vunpack.c.l.b16 %v1400
    %v1736 = vunpack.c.h.b16 %v1400
    %v1737 = vunpack.c.l.b16 %v1401
    %v1738 = vunpack.c.h.b16 %v1401
    %v1739 = vunpack.c.l.b16 %v1402
    %v1740 = vunpack.c.h.b16 %v1402
    %v1741 = vunpack.c.l.b16 %v1403
    %v1742 = vunpack.c.h.b16 %v1403
    %v1743 = vunpack.c.l.b16 %v1404
    %v1744 = vunpack.c.h.b16 %v1404
    %v1745 = vunpack.c.l.b16 %v1405
    %v1746 = vunpack.c.h.b16 %v1405
    %v1747 = vunpack.c.l.b16 %v1406
    %v1748 = vunpack.c.h.b16 %v1406
    %v1749 = vunpack.c.l.b16 %v1407
    %v1750 = vunpack.c.h.b16 %v1407
    %v1751 = vunpack.c.l.b16 %v1408
    %v1752 = vunpack.c.h.b16 %v1408
    %v1753 = vunpack.c.l.b16 %v1409
    %v1754 = vunpack.c.h.b16 %v1409
    %v1755 = vunpack.c.l.b16 %v1410
    %v1756 = vunpack.c.h.b16 %v1410
    %v1757 = vunpack.c.l.b16 %v1411
    %v1758 = vunpack.c.h.b16 %v1411
    %v1759 = vunpack.c.l.b16 %v1412
    %v1760 = vunpack.c.h.b16 %v1412
    %v1761 = vunpack.c.l.b16 %v1413
    %v1762 = vunpack.c.h.b16 %v1413
    %v1763 = vunpack.c.l.b16 %v1414
    %v1764 = vunpack.c.h.b16 %v1414
    %v1765 = vunpack.c.l.b16 %v1415
    %v1766 = vunpack.c.h.b16 %v1415
    %v1767 = vunpack.c.l.b16 %v1416
    %v1768 = vunpack.c.h.b16 %v1416
    %v1769 = vunpack.c.l.b16 %v1417
    %v1770 = vunpack.c.h.b16 %v1417
    %v1771 = vunpack.c.l.b16 %v1418
    %v1772 = vunpack.c.h.b16 %v1418
    %v1773 = vunpack.c.l.b16 %v1419
    %v1774 = vunpack.c.h.b16 %v1419
    %v1775 = vunpack.c.l.b16 %v1420
    %v1776 = vunpack.c.h.b16 %v1420
    %v1777 = vunpack.c.l.b16 %v1421
    %v1778 = vunpack.c.h.b16 %v1421
    %v1779 = vunpack.c.l.b16 %v1422
    %v1780 = vunpack.c.h.b16 %v1422
    %v1781 = vunpack.c.l.b16 %v1423
    %v1782 = vunpack.c.h.b16 %v1423
    %v1783 = vunpack.c.l.b16 %v1424
    %v1784 = vunpack.c.h.b16 %v1424
    %v1785 = vunpack.c.l.b16 %v1425
    %v1786 = vunpack.c.h.b16 %v1425
    %v1787 = vunpack.c.l.b16 %v1426
    %v1788 = vunpack.c.h.b16 %v1426
    %v1789 = vunpack.c.l.b16 %v1427
    %v1790 = vunpack.c.h.b16 %v1427
    %v1791 = vunpack.c.l.b16 %v1428
    %v1792 = vunpack.c.h.b16 %v1428
    %v1793 = vunpack.c.l.b16 %v1429
    %v1794 = vunpack.c.h.b16 %v1429
    %v1795 = vunpack.c.l.b16 %v1430
    %v1796 = vunpack.c.h.b16 %v1430
    %v1797 = vunpack.c.l.b16 %v1431
    %v1798 = vunpack.c.h.b16 %v1431
    %v1799 = vunpack.c.l.b16 %v1432
    %v1800 = vunpack.c.h.b16 %v1432
    %v1801 = vunpack.c.l.b16 %v1433
    %v1802 = vunpack.c.h.b16 %v1433
    %v1803 = vunpack.c.l.b16 %v1434
    %v1804 = vunpack.c.h.b16 %v1434
    %v1805 = vunpack.c.l.b16 %v1435
    %v1806 = vunpack.c.h.b16 %v1435
    %v1807 = vunpack.c.l.b16 %v1436
    %v1808 = vunpack.c.h.b16 %v1436
    %v1809 = vunpack.c.l.b16 %v1437
    %v1810 = vunpack.c.h.b16 %v1437
    %v1811 = vunpack.c.l.b16 %v1438
    %v1812 = vunpack.c.h.b16 %v1438
    %v1813 = vunpack.c.l.b16 %v1439
    %v1814 = vunpack.c.h.b16 %v1439
    %v1815 = vunpack.c.l.b16 %v1440
    %v1816 = vunpack.c.h.b16 %v1440
    %v1817 = vunpack.c.l.b16 %v1441
    %v1818 = vunpack.c.h.b16 %v1441
    %v1819 = vunpack.c.l.b16 %v1442
    %v1820 = vunpack.c.h.b16 %v1442
    %v1821 = vunpack.c.l.b16 %v1443
    %v1822 = vunpack.c.h.b16 %v1443
    %v1823 = vunpack.c.l.b16 %v1444
    %v1824 = vunpack.c.h.b16 %v1444
    %v1825 = vunpack.c.l.b16 %v1445
    %v1826 = vunpack.c.h.b16 %v1445
    %v1827 = vunpack.c.l.b16 %v1446
    %v1828 = vunpack.c.h.b16 %v1446
    %v1829 = vunpack.c.l.b16 %v1447
    %v1830 = vunpack.c.h.b16 %v1447
    %v1831 = vunpack.c.l.b16 %v1448
    %v1832 = vunpack.c.h.b16 %v1448
    %v1833 = vunpack.c.l.b16 %v1449
    %v1834 = vunpack.c.h.b16 %v1449
    %v1835 = vunpack.c.l.b16 %v1450
    %v1836 = vunpack.c.h.b16 %v1450
    %v1837 = vunpack.c.l.b16 %v1451
    %v1838 = vunpack.c.h.b16 %v1451
    %v1839 = vunpack.c.l.b16 %v1452
    %v1840 = vunpack.c.h.b16 %v1452
    %v1841 = vunpack.c.l.b16 %v1453
    %v1842 = vunpack.c.h.b16 %v1453
    %v1843 = vunpack.c.l.b16 %v1454
    %v1844 = vunpack.c.h.b16 %v1454
    %v1845 = vunpack.c.l.b16 %v1455
    %v1846 = vunpack.c.h.b16 %v1455
    %v1847 = vunpack.c.l.b16 %v1456
    %v1848 = vunpack.c.h.b16 %v1456
    %v1849 = vunpack.c.l.b16 %v1457
    %v1850 = vunpack.c.h.b16 %v1457
    %v1851 = vunpack.c.l.b16 %v1458
    %v1852 = vunpack.c.h.b16 %v1458
    %v1853 = vunpack.c.l.b16 %v1459
    %v1854 = vunpack.c.h.b16 %v1459
    %v1855 = vunpack.c.l.b16 %v1460
    %v1856 = vunpack.c.h.b16 %v1460
    %v1857 = vunpack.c.l.b16 %v1461
    %v1858 = vunpack.c.h.b16 %v1461
    %v1859 = vunpack.c.l.b16 %v1462
    %v1860 = vunpack.c.h.b16 %v1462
    %v1861 = vunpack.c.l.b16 %v1463
    %v1862 = vunpack.c.h.b16 %v1463
    %v1863 = vunpack.c.l.b16 %v1464
    %v1864 = vunpack.c.h.b16 %v1464
    %v1865 = vunpack.c.l.b16 %v1465
    %v1866 = vunpack.c.h.b16 %v1465
    %v1867 = vunpack.c.l.b16 %v1466
    %v1868 = vunpack.c.h.b16 %v1466
    %v1869 = vunpack.c.l.b16 %v1467
    %v1870 = vunpack.c.h.b16 %v1467
    %v1871 = vunpack.c.l.b16 %v1468
    %v1872 = vunpack.c.h.b16 %v1468
    %v1873 = vunpack.c.l.b16 %v1469
    %v1874 = vunpack.c.h.b16 %v1469
    %v1875 = vunpack.c.l.b16 %v1470
    %v1876 = vunpack.c.h.b16 %v1470
    %v1877 = vpack.c.b16 %v1625, %v1621
    %v1878 = vpack.c.b16 %v1626, %v1622
    %v1879 = vpack.c.b16 %v1627, %v1623
    %v1880 = vpack.c.b16 %v1628, %v1624
    %v1881 = vpack.c.b16 %v1633, %v1629
    %v1882 = vpack.c.b16 %v1634, %v1630
    %v1883 = vpack.c.b16 %v1635, %v1631
    %v1884 = vpack.c.b16 %v1636, %v1632
    %v1885 = vpack.c.b16 %v1641, %v1637
    %v1886 = vpack.c.b16 %v1642, %v1638
    %v1887 = vpack.c.b16 %v1643, %v1639
    %v1888 = vpack.c.b16 %v1644, %v1640
    %v1889 = vpack.c.b16 %v1649, %v1645
    %v1890 = vpack.c.b16 %v1650, %v1646
    %v1891 = vpack.c.b16 %v1651, %v1647
    %v1892 = vpack.c.b16 %v1652, %v1648
    %v1893 = vpack.c.b16 %v1657, %v1653
    %v1894 = vpack.c.b16 %v1658, %v1654
    %v1895 = vpack.c.b16 %v1659, %v1655
    %v1896 = vpack.c.b16 %v1660, %v1656
    %v1897 = vpack.c.b16 %v1665, %v1661
    %v1898 = vpack.c.b16 %v1666, %v1662
    %v1899 = vpack.c.b16 %v1667, %v1663
    %v1900 = vpack.c.b16 %v1668, %v1664
    %v1901 = vpack.c.b16 %v1673, %v1669
    %v1902 = vpack.c.b16 %v1674, %v1670
    %v1903 = vpack.c.b16 %v1675, %v1671
    %v1904 = vpack.c.b16 %v1676, %v1672
    %v1905 = vpack.c.b16 %v1681, %v1677
    %v1906 = vpack.c.b16 %v1682, %v1678
    %v1907 = vpack.c.b16 %v1683, %v1679
    %v1908 = vpack.c.b16 %v1684, %v1680
    %v1909 = vpack.c.b16 %v1689, %v1685
    %v1910 = vpack.c.b16 %v1690, %v1686
    %v1911 = vpack.c.b16 %v1691, %v1687
    %v1912 = vpack.c.b16 %v1692, %v1688
    %v1913 = vpack.c.b16 %v1697, %v1693
    %v1914 = vpack.c.b16 %v1698, %v1694
    %v1915 = vpack.c.b16 %v1699, %v1695
    %v1916 = vpack.c.b16 %v1700, %v1696
    %v1917 = vpack.c.b16 %v1705, %v1701
    %v1918 = vpack.c.b16 %v1706, %v1702
    %v1919 = vpack.c.b16 %v1707, %v1703
    %v1920 = vpack.c.b16 %v1708, %v1704
    %v1921 = vpack.c.b16 %v1713, %v1709
    %v1922 = vpack.c.b16 %v1714, %v1710
    %v1923 = vpack.c.b16 %v1715, %v1711
    %v1924 = vpack.c.b16 %v1716, %v1712
    %v1925 = vpack.c.b16 %v1721, %v1717
    %v1926 = vpack.c.b16 %v1722, %v1718
    %v1927 = vpack.c.b16 %v1723, %v1719
    %v1928 = vpack.c.b16 %v1724, %v1720
    %v1929 = vpack.c.b16 %v1729, %v1725
    %v1930 = vpack.c.b16 %v1730, %v1726
    %v1931 = vpack.c.b16 %v1731, %v1727
    %v1932 = vpack.c.b16 %v1732, %v1728
    %v1933 = vpack.c.b16 %v1737, %v1733
    %v1934 = vpack.c.b16 %v1738, %v1734
    %v1935 = vpack.c.b16 %v1739, %v1735
    %v1936 = vpack.c.b16 %v1740, %v1736
    %v1937 = vpack.c.b16 %v1745, %v1741
    %v1938 = vpack.c.b16 %v1746, %v1742
    %v1939 = vpack.c.b16 %v1747, %v1743
    %v1940 = vpack.c.b16 %v1748, %v1744
    %v1941 = vpack.c.b16 %v1753, %v1749
    %v1942 = vpack.c.b16 %v1754, %v1750
    %v1943 = vpack.c.b16 %v1755, %v1751
    %v1944 = vpack.c.b16 %v1756, %v1752
    %v1945 = vpack.c.b16 %v1761, %v1757
    %v1946 = vpack.c.b16 %v1762, %v1758
    %v1947 = vpack.c.b16 %v1763, %v1759
    %v1948 = vpack.c.b16 %v1764, %v1760
    %v1949 = vpack.c.b16 %v1769, %v1765
    %v1950 = vpack.c.b16 %v1770, %v1766
    %v1951 = vpack.c.b16 %v1771, %v1767
    %v1952 = vpack.c.b16 %v1772, %v1768
    %v1953 = vpack.c.b16 %v1777, %v1773
    %v1954 = vpack.c.b16 %v1778, %v1774
    %v1955 = vpack.c.b16 %v1779, %v1775
    %v1956 = vpack.c.b16 %v1780, %v1776
    %v1957 = vpack.c.b16 %v1785, %v1781
    %v1958 = vpack.c.b16 %v1786, %v1782
    %v1959 = vpack.c.b16 %v1787, %v1783
    %v1960 = vpack.c.b16 %v1788, %v1784
    %v1961 = vpack.c.b16 %v1793, %v1789
    %v1962 = vpack.c.b16 %v1794, %v1790
    %v1963 = vpack.c.b16 %v1795, %v1791
    %v1964 = vpack.c.b16 %v1796, %v1792
    %v1965 = vpack.c.b16 %v1801, %v1797
    %v1966 = vpack.c.b16 %v1802, %v1798
    %v1967 = vpack.c.b16 %v1803, %v1799
    %v1968 = vpack.c.b16 %v1804, %v1800
    %v1969 = vpack.c.b16 %v1809, %v1805
    %v1970 = vpack.c.b16 %v1810, %v1806
    %v1971 = vpack.c.b16 %v1811, %v1807
    %v1972 = vpack.c.b16 %v1812, %v1808
    %v1973 = vpack.c.b16 %v1817, %v1813
    %v1974 = vpack.c.b16 %v1818, %v1814
    %v1975 = vpack.c.b16 %v1819, %v1815
    %v1976 = vpack.c.b16 %v1820, %v1816
    %v1977 = vpack.c.b16 %v1825, %v1821
    %v1978 = vpack.c.b16 %v1826, %v1822
    %v1979 = vpack.c.b16 %v1827, %v1823
    %v1980 = vpack.c.b16 %v1828, %v1824
    %v1981 = vpack.c.b16 %v1833, %v1829
    %v1982 = vpack.c.b16 %v1834, %v1830
    %v1983 = vpack.c.b16 %v1835, %v1831
    %v1984 = vpack.c.b16 %v1836, %v1832
    %v1985 = vpack.c.b16 %v1841, %v1837
    %v1986 = vpack.c.b16 %v1842, %v1838
    %v1987 = vpack.c.b16 %v1843, %v1839
    %v1988 = vpack.c.b16 %v1844, %v1840
    %v1989 = vpack.c.b16 %v1849, %v1845
    %v1990 = vpack.c.b16 %v1850, %v1846
    %v1991 = vpack.c.b16 %v1851, %v1847
    %v1992 = vpack.c.b16 %v1852, %v1848
    %v1993 = vpack.c.b16 %v1857, %v1853
    %v1994 = vpack.c.b16 %v1858, %v1854
    %v1995 = vpack.c.b16 %v1859, %v1855
    %v1996 = vpack.c.b16 %v1860, %v1856
    %v1997 = vpack.c.b16 %v1865, %v1861
    %v1998 = vpack.c.b16 %v1866, %v1862
    %v1999 = vpack.c.b16 %v1867, %v1863
    %v2000 = vpack.c.b16 %v1868, %v1864
    %v2001 = vpack.c.b16 %v1873, %v1869
    %v2002 = vpack.c.b16 %v1874, %v1870
    %v2003 = vpack.c.b16 %v1875, %v1871
    %v2004 = vpack.c.b16 %v1876, %v1872
    %2133 = vmatprep.subr.bf16.mxu0 %v1906
    %2134 = vmatpush1.bf16.msra.mxu0 %v1905
    %2135 = vmatprep.subr.bf16.mxu0 %v1902
    %2136 = vmatpush1.bf16.msra.mxu0 %v1901
    %2137 = vmatprep.subr.bf16.mxu0 %v1898
    %2138 = vmatpush1.bf16.msra.mxu0 %v1897
    %2139 = vmatprep.subr.bf16.mxu0 %v1894
    %2140 = vmatpush1.bf16.msra.mxu0 %v1893
    %2141 = vmatprep.subr.bf16.mxu0 %v1890
    %2142 = vmatpush1.bf16.msra.mxu0 %v1889
    %2143 = vmatprep.subr.bf16.mxu0 %v1886
    %2144 = vmatpush1.bf16.msra.mxu0 %v1885
    %2145 = vmatprep.subr.bf16.mxu0 %v1882
    %2146 = vmatpush1.bf16.msra.mxu0 %v1881
    %2147 = vmatprep.subr.bf16.mxu0 %v1878
    %2148 = vmatpush1.bf16.msra.mxu0 %v1877
    %2149 = vmatprep.subr.bf16.mxu0 %v1938
    %2150 = vmatpush2.bf16.msra.mxu0 %v1937
    %2151 = vmatprep.subr.bf16.mxu0 %v1934
    %2152 = vmatpush2.bf16.msra.mxu0 %v1933
    %2153 = vmatprep.subr.bf16.mxu0 %v1930
    %2154 = vmatpush2.bf16.msra.mxu0 %v1929
    %2155 = vmatprep.subr.bf16.mxu0 %v1926
    %2156 = vmatpush2.bf16.msra.mxu0 %v1925
    %2157 = vmatprep.subr.bf16.mxu0 %v1922
    %2158 = vmatpush2.bf16.msra.mxu0 %v1921
    %2159 = vmatprep.subr.bf16.mxu0 %v1918
    %2160 = vmatpush2.bf16.msra.mxu0 %v1917
    %2161 = vmatprep.subr.bf16.mxu0 %v1914
    %2162 = vmatpush2.bf16.msra.mxu0 %v1913
    %2163 = vmatprep.subr.bf16.mxu0 %v1910
    %2164 = vmatpush2.bf16.msra.mxu0 %v1909
    %2165 = vmatprep.mubr.bf16.mxu0 %v370
    %2166 = vmatmul.mubr.bf16.gmra.mxu0 %v369
    %v2167 = vpop.f32.mrf.mxu0
    %v2168 = vadd.f32 %v1476, %v2167
    %v2169 = vpop.f32.mrf.mxu0
    %v2170 = vadd.f32 %v1480, %v2169
    %v2171 = vpop.f32.mrf.mxu0
    %v2172 = vadd.f32 %v1476, %v2171
    %v2173 = vpop.f32.mrf.mxu0
    %v2174 = vadd.f32 %v1480, %v2173
    %2175 = vdwg.mxu0
    %2176 = vmatprep.subr.bf16.mxu0 %v1970
    %2177 = vmatpush1.bf16.msra.mxu0 %v1969
    %2178 = vmatprep.subr.bf16.mxu0 %v1966
    %2179 = vmatpush1.bf16.msra.mxu0 %v1965
    %2180 = vmatprep.subr.bf16.mxu0 %v1962
    %2181 = vmatpush1.bf16.msra.mxu0 %v1961
    %2182 = vmatprep.subr.bf16.mxu0 %v1958
    %2183 = vmatpush1.bf16.msra.mxu0 %v1957
    %2184 = vmatprep.subr.bf16.mxu0 %v1954
    %2185 = vmatpush1.bf16.msra.mxu0 %v1953
    %2186 = vmatprep.subr.bf16.mxu0 %v1950
    %2187 = vmatpush1.bf16.msra.mxu0 %v1949
    %2188 = vmatprep.subr.bf16.mxu0 %v1946
    %2189 = vmatpush1.bf16.msra.mxu0 %v1945
    %2190 = vmatprep.subr.bf16.mxu0 %v1942
    %2191 = vmatpush1.bf16.msra.mxu0 %v1941
    %2192 = vmatprep.subr.bf16.mxu0 %v2002
    %2193 = vmatpush2.bf16.msra.mxu0 %v2001
    %2194 = vmatprep.subr.bf16.mxu0 %v1998
    %2195 = vmatpush2.bf16.msra.mxu0 %v1997
    %2196 = vmatprep.subr.bf16.mxu0 %v1994
    %2197 = vmatpush2.bf16.msra.mxu0 %v1993
    %2198 = vmatprep.subr.bf16.mxu0 %v1990
    %2199 = vmatpush2.bf16.msra.mxu0 %v1989
    %2200 = vmatprep.subr.bf16.mxu0 %v1986
    %2201 = vmatpush2.bf16.msra.mxu0 %v1985
    %2202 = vmatprep.subr.bf16.mxu0 %v1982
    %2203 = vmatpush2.bf16.msra.mxu0 %v1981
    %2204 = vmatprep.subr.bf16.mxu0 %v1978
    %2205 = vmatpush2.bf16.msra.mxu0 %v1977
    %2206 = vmatprep.subr.bf16.mxu0 %v1974
    %2207 = vmatpush2.bf16.msra.mxu0 %v1973
    %2208 = vmatprep.mubr.bf16.mxu0 %v372
    %2209 = vmatmul.mubr.bf16.gmra.mxu0 %v371
    %v2210 = vpop.f32.mrf.mxu0
    %v2211 = vadd.f32 %v2168, %v2210
    %v2212 = vpop.f32.mrf.mxu0
    %v2213 = vadd.f32 %v2170, %v2212
    %v2214 = vpop.f32.mrf.mxu0
    %v2215 = vadd.f32 %v2172, %v2214
    %v2216 = vpop.f32.mrf.mxu0
    %v2217 = vadd.f32 %v2174, %v2216
    %2218 = vdwg.mxu0
    %2219 = vmatprep.subr.bf16.mxu0 %v1908
    %2220 = vmatpush1.bf16.msra.mxu0 %v1907
    %2221 = vmatprep.subr.bf16.mxu0 %v1904
    %2222 = vmatpush1.bf16.msra.mxu0 %v1903
    %2223 = vmatprep.subr.bf16.mxu0 %v1900
    %2224 = vmatpush1.bf16.msra.mxu0 %v1899
    %2225 = vmatprep.subr.bf16.mxu0 %v1896
    %2226 = vmatpush1.bf16.msra.mxu0 %v1895
    %2227 = vmatprep.subr.bf16.mxu0 %v1892
    %2228 = vmatpush1.bf16.msra.mxu0 %v1891
    %2229 = vmatprep.subr.bf16.mxu0 %v1888
    %2230 = vmatpush1.bf16.msra.mxu0 %v1887
    %2231 = vmatprep.subr.bf16.mxu0 %v1884
    %2232 = vmatpush1.bf16.msra.mxu0 %v1883
    %2233 = vmatprep.subr.bf16.mxu0 %v1880
    %2234 = vmatpush1.bf16.msra.mxu0 %v1879
    %2235 = vmatprep.subr.bf16.mxu0 %v1940
    %2236 = vmatpush2.bf16.msra.mxu0 %v1939
    %2237 = vmatprep.subr.bf16.mxu0 %v1936
    %2238 = vmatpush2.bf16.msra.mxu0 %v1935
    %2239 = vmatprep.subr.bf16.mxu0 %v1932
    %2240 = vmatpush2.bf16.msra.mxu0 %v1931
    %2241 = vmatprep.subr.bf16.mxu0 %v1928
    %2242 = vmatpush2.bf16.msra.mxu0 %v1927
    %2243 = vmatprep.subr.bf16.mxu0 %v1924
    %2244 = vmatpush2.bf16.msra.mxu0 %v1923
    %2245 = vmatprep.subr.bf16.mxu0 %v1920
    %2246 = vmatpush2.bf16.msra.mxu0 %v1919
    %2247 = vmatprep.subr.bf16.mxu0 %v1916
    %2248 = vmatpush2.bf16.msra.mxu0 %v1915
    %2249 = vmatprep.subr.bf16.mxu0 %v1912
    %2250 = vmatpush2.bf16.msra.mxu0 %v1911
    %2251 = vmatprep.mubr.bf16.mxu0 %v370
    %2252 = vmatmul.mubr.bf16.gmra.mxu0 %v369
    %v2253 = vpop.f32.mrf.mxu0
    %v2254 = vadd.f32 %v1484, %v2253
    %v2255 = vpop.f32.mrf.mxu0
    %v2256 = vadd.f32 %v1488, %v2255
    %v2257 = vpop.f32.mrf.mxu0
    %v2258 = vadd.f32 %v1484, %v2257
    %v2259 = vpop.f32.mrf.mxu0
    %v2260 = vadd.f32 %v1488, %v2259
    %2261 = vdwg.mxu0
    %2262 = vmatprep.subr.bf16.mxu0 %v1972
    %2263 = vmatpush1.bf16.msra.mxu0 %v1971
    %2264 = vmatprep.subr.bf16.mxu0 %v1968
    %2265 = vmatpush1.bf16.msra.mxu0 %v1967
    %2266 = vmatprep.subr.bf16.mxu0 %v1964
    %2267 = vmatpush1.bf16.msra.mxu0 %v1963
    %2268 = vmatprep.subr.bf16.mxu0 %v1960
    %2269 = vmatpush1.bf16.msra.mxu0 %v1959
    %2270 = vmatprep.subr.bf16.mxu0 %v1956
    %2271 = vmatpush1.bf16.msra.mxu0 %v1955
    %2272 = vmatprep.subr.bf16.mxu0 %v1952
    %2273 = vmatpush1.bf16.msra.mxu0 %v1951
    %2274 = vmatprep.subr.bf16.mxu0 %v1948
    %2275 = vmatpush1.bf16.msra.mxu0 %v1947
    %2276 = vmatprep.subr.bf16.mxu0 %v1944
    %2277 = vmatpush1.bf16.msra.mxu0 %v1943
    %2278 = vmatprep.subr.bf16.mxu0 %v2004
    %2279 = vmatpush2.bf16.msra.mxu0 %v2003
    %2280 = vmatprep.subr.bf16.mxu0 %v2000
    %2281 = vmatpush2.bf16.msra.mxu0 %v1999
    %2282 = vmatprep.subr.bf16.mxu0 %v1996
    %2283 = vmatpush2.bf16.msra.mxu0 %v1995
    %2284 = vmatprep.subr.bf16.mxu0 %v1992
    %2285 = vmatpush2.bf16.msra.mxu0 %v1991
    %2286 = vmatprep.subr.bf16.mxu0 %v1988
    %2287 = vmatpush2.bf16.msra.mxu0 %v1987
    %2288 = vmatprep.subr.bf16.mxu0 %v1984
    %2289 = vmatpush2.bf16.msra.mxu0 %v1983
    %2290 = vmatprep.subr.bf16.mxu0 %v1980
    %2291 = vmatpush2.bf16.msra.mxu0 %v1979
    %2292 = vmatprep.subr.bf16.mxu0 %v1976
    %2293 = vmatpush2.bf16.msra.mxu0 %v1975
    %2294 = vmatprep.mubr.bf16.mxu0 %v372
    %2295 = vmatmul.mubr.bf16.gmra.mxu0 %v371
    %v2296 = vpop.f32.mrf.mxu0
    %v2297 = vadd.f32 %v2254, %v2296
    %v2298 = vpop.f32.mrf.mxu0
    %v2299 = vadd.f32 %v2256, %v2298
    %v2300 = vpop.f32.mrf.mxu0
    %v2301 = vadd.f32 %v2258, %v2300
    %v2302 = vpop.f32.mrf.mxu0
    %v2303 = vadd.f32 %v2260, %v2302
    %2304 = vdwg.mxu0
    %v2305 = vpack.c.bf16 %v2215, %v2211
    %v2306 = vpack.c.bf16 %v2217, %v2213
    %v2307 = vpack.c.bf16 %v2301, %v2297
    %v2308 = vpack.c.bf16 %v2303, %v2299
    %v2309 = vtanh.bf16.pop %v2305
    %v2310 = vtanh.bf16.pop %v2306
    %v2311 = vtanh.bf16.pop %v2307
    %v2312 = vtanh.bf16.pop %v2308
    %v2313 = vld [vmem:[#allocation7] sm:$0xf]
    %v2314 = vld [vmem:[#allocation7 + $0x4] sm:$0xf]
    %v2315 = vld [vmem:[#allocation7 + $0x8] sm:$0xf]
    %v2316 = vld [vmem:[#allocation7 + $0xc] sm:$0xf]
    %v2317 = vld [vmem:[#allocation7 + $0x10] sm:$0xf]
    %v2318 = vld [vmem:[#allocation7 + $0x14] sm:$0xf]
    %v2319 = vld [vmem:[#allocation7 + $0x18] sm:$0xf]
    %v2320 = vld [vmem:[#allocation7 + $0x1c] sm:$0xf]
    %v2321 = vld [vmem:[#allocation7 + $0x20] sm:$0xf]
    %v2322 = vld [vmem:[#allocation7 + $0x24] sm:$0xf]
    %v2323 = vld [vmem:[#allocation7 + $0x28] sm:$0xf]
    %v2324 = vld [vmem:[#allocation7 + $0x2c] sm:$0xf]
    %v2325 = vld [vmem:[#allocation7 + $0x30] sm:$0xf]
    %v2326 = vld [vmem:[#allocation7 + $0x34] sm:$0xf]
    %v2327 = vld [vmem:[#allocation7 + $0x38] sm:$0xf]
    %v2328 = vld [vmem:[#allocation7 + $0x3c] sm:$0xf]
    %v2329 = vld [vmem:[#allocation7 + $0x40] sm:$0xf]
    %v2330 = vld [vmem:[#allocation7 + $0x44] sm:$0xf]
    %v2331 = vld [vmem:[#allocation7 + $0x48] sm:$0xf]
    %v2332 = vld [vmem:[#allocation7 + $0x4c] sm:$0xf]
    %v2333 = vld [vmem:[#allocation7 + $0x50] sm:$0xf]
    %v2334 = vld [vmem:[#allocation7 + $0x54] sm:$0xf]
    %v2335 = vld [vmem:[#allocation7 + $0x58] sm:$0xf]
    %v2336 = vld [vmem:[#allocation7 + $0x5c] sm:$0xf]
    %v2337 = vld [vmem:[#allocation7 + $0x60] sm:$0xf]
    %v2338 = vld [vmem:[#allocation7 + $0x64] sm:$0xf]
    %v2339 = vld [vmem:[#allocation7 + $0x68] sm:$0xf]
    %v2340 = vld [vmem:[#allocation7 + $0x6c] sm:$0xf]
    %v2341 = vld [vmem:[#allocation7 + $0x70] sm:$0xf]
    %v2342 = vld [vmem:[#allocation7 + $0x74] sm:$0xf]
    %v2343 = vld [vmem:[#allocation7 + $0x78] sm:$0xf]
    %v2344 = vld [vmem:[#allocation7 + $0x7c] sm:$0xf]
    %v2345 = vld [vmem:[#allocation7 + $0x80] sm:$0xf]
    %v2346 = vld [vmem:[#allocation7 + $0x84] sm:$0xf]
    %v2347 = vld [vmem:[#allocation7 + $0x88] sm:$0xf]
    %v2348 = vld [vmem:[#allocation7 + $0x8c] sm:$0xf]
    %v2349 = vld [vmem:[#allocation7 + $0x90] sm:$0xf]
    %v2350 = vld [vmem:[#allocation7 + $0x94] sm:$0xf]
    %v2351 = vld [vmem:[#allocation7 + $0x98] sm:$0xf]
    %v2352 = vld [vmem:[#allocation7 + $0x9c] sm:$0xf]
    %v2353 = vld [vmem:[#allocation7 + $0xa0] sm:$0xf]
    %v2354 = vld [vmem:[#allocation7 + $0xa4] sm:$0xf]
    %v2355 = vld [vmem:[#allocation7 + $0xa8] sm:$0xf]
    %v2356 = vld [vmem:[#allocation7 + $0xac] sm:$0xf]
    %v2357 = vld [vmem:[#allocation7 + $0xb0] sm:$0xf]
    %v2358 = vld [vmem:[#allocation7 + $0xb4] sm:$0xf]
    %v2359 = vld [vmem:[#allocation7 + $0xb8] sm:$0xf]
    %v2360 = vld [vmem:[#allocation7 + $0xbc] sm:$0xf]
    %v2361 = vld [vmem:[#allocation7 + $0xc0] sm:$0xf]
    %v2362 = vld [vmem:[#allocation7 + $0xc4] sm:$0xf]
    %v2363 = vld [vmem:[#allocation7 + $0xc8] sm:$0xf]
    %v2364 = vld [vmem:[#allocation7 + $0xcc] sm:$0xf]
    %v2365 = vld [vmem:[#allocation7 + $0xd0] sm:$0xf]
    %v2366 = vld [vmem:[#allocation7 + $0xd4] sm:$0xf]
    %v2367 = vld [vmem:[#allocation7 + $0xd8] sm:$0xf]
    %v2368 = vld [vmem:[#allocation7 + $0xdc] sm:$0xf]
    %v2369 = vld [vmem:[#allocation7 + $0xe0] sm:$0xf]
    %v2370 = vld [vmem:[#allocation7 + $0xe4] sm:$0xf]
    %v2371 = vld [vmem:[#allocation7 + $0xe8] sm:$0xf]
    %v2372 = vld [vmem:[#allocation7 + $0xec] sm:$0xf]
    %v2373 = vld [vmem:[#allocation7 + $0xf0] sm:$0xf]
    %v2374 = vld [vmem:[#allocation7 + $0xf4] sm:$0xf]
    %v2375 = vld [vmem:[#allocation7 + $0xf8] sm:$0xf]
    %v2376 = vld [vmem:[#allocation7 + $0xfc] sm:$0xf]
    %v2377 = vld [vmem:[%s8] sm:$0x1]
    %v2379 = vlaneseq
    %v2380 = vshrl.u32 %v2379, 7
    %v2381 = vsub.s32 0, %v2380
    %v2382 = vrot.slane %v2377, %v2381
    %v2448 = vunpack.c.l.b16 %v2313
    %v2449 = vunpack.c.l.b16 %v2314
    %v2450 = vunpack.c.l.b16 %v2315
    %v2451 = vunpack.c.l.b16 %v2316
    %v2452 = vunpack.c.l.b16 %v2317
    %v2453 = vunpack.c.l.b16 %v2318
    %v2454 = vunpack.c.l.b16 %v2319
    %v2455 = vunpack.c.l.b16 %v2320
    %v2456 = vunpack.c.l.b16 %v2321
    %v2457 = vunpack.c.l.b16 %v2322
    %v2458 = vunpack.c.l.b16 %v2323
    %v2459 = vunpack.c.l.b16 %v2324
    %v2460 = vunpack.c.l.b16 %v2325
    %v2461 = vunpack.c.l.b16 %v2326
    %v2462 = vunpack.c.l.b16 %v2327
    %v2463 = vunpack.c.l.b16 %v2328
    %v2464 = vunpack.c.l.b16 %v2329
    %v2465 = vunpack.c.l.b16 %v2330
    %v2466 = vunpack.c.l.b16 %v2331
    %v2467 = vunpack.c.l.b16 %v2332
    %v2468 = vunpack.c.l.b16 %v2333
    %v2469 = vunpack.c.l.b16 %v2334
    %v2470 = vunpack.c.l.b16 %v2335
    %v2471 = vunpack.c.l.b16 %v2336
    %v2472 = vunpack.c.l.b16 %v2337
    %v2473 = vunpack.c.l.b16 %v2338
    %v2474 = vunpack.c.l.b16 %v2339
    %v2475 = vunpack.c.l.b16 %v2340
    %v2476 = vunpack.c.l.b16 %v2341
    %v2477 = vunpack.c.l.b16 %v2342
    %v2478 = vunpack.c.l.b16 %v2343
    %v2479 = vunpack.c.l.b16 %v2344
    %v2480 = vunpack.c.l.b16 %v2345
    %v2481 = vunpack.c.l.b16 %v2346
    %v2482 = vunpack.c.l.b16 %v2347
    %v2483 = vunpack.c.l.b16 %v2348
    %v2484 = vunpack.c.l.b16 %v2349
    %v2485 = vunpack.c.l.b16 %v2350
    %v2486 = vunpack.c.l.b16 %v2351
    %v2487 = vunpack.c.l.b16 %v2352
    %v2488 = vunpack.c.l.b16 %v2353
    %v2489 = vunpack.c.l.b16 %v2354
    %v2490 = vunpack.c.l.b16 %v2355
    %v2491 = vunpack.c.l.b16 %v2356
    %v2492 = vunpack.c.l.b16 %v2357
    %v2493 = vunpack.c.l.b16 %v2358
    %v2494 = vunpack.c.l.b16 %v2359
    %v2495 = vunpack.c.l.b16 %v2360
    %v2496 = vunpack.c.l.b16 %v2361
    %v2497 = vunpack.c.l.b16 %v2362
    %v2498 = vunpack.c.l.b16 %v2363
    %v2499 = vunpack.c.l.b16 %v2364
    %v2500 = vunpack.c.l.b16 %v2365
    %v2501 = vunpack.c.l.b16 %v2366
    %v2502 = vunpack.c.l.b16 %v2367
    %v2503 = vunpack.c.l.b16 %v2368
    %v2504 = vunpack.c.l.b16 %v2369
    %v2505 = vunpack.c.l.b16 %v2370
    %v2506 = vunpack.c.l.b16 %v2371
    %v2507 = vunpack.c.l.b16 %v2372
    %v2508 = vunpack.c.l.b16 %v2373
    %v2509 = vunpack.c.l.b16 %v2374
    %v2510 = vunpack.c.l.b16 %v2375
    %v2511 = vunpack.c.l.b16 %v2376
    %v2512 = vpack.c.b16 %v2449, %v2448
    %v2513 = vpack.c.b16 %v2451, %v2450
    %v2514 = vpack.c.b16 %v2453, %v2452
    %v2515 = vpack.c.b16 %v2455, %v2454
    %v2516 = vpack.c.b16 %v2457, %v2456
    %v2517 = vpack.c.b16 %v2459, %v2458
    %v2518 = vpack.c.b16 %v2461, %v2460
    %v2519 = vpack.c.b16 %v2463, %v2462
    %v2520 = vpack.c.b16 %v2465, %v2464
    %v2521 = vpack.c.b16 %v2467, %v2466
    %v2522 = vpack.c.b16 %v2469, %v2468
    %v2523 = vpack.c.b16 %v2471, %v2470
    %v2524 = vpack.c.b16 %v2473, %v2472
    %v2525 = vpack.c.b16 %v2475, %v2474
    %v2526 = vpack.c.b16 %v2477, %v2476
    %v2527 = vpack.c.b16 %v2479, %v2478
    %v2528 = vpack.c.b16 %v2481, %v2480
    %v2529 = vpack.c.b16 %v2483, %v2482
    %v2530 = vpack.c.b16 %v2485, %v2484
    %v2531 = vpack.c.b16 %v2487, %v2486
    %v2532 = vpack.c.b16 %v2489, %v2488
    %v2533 = vpack.c.b16 %v2491, %v2490
    %v2534 = vpack.c.b16 %v2493, %v2492
    %v2535 = vpack.c.b16 %v2495, %v2494
    %v2536 = vpack.c.b16 %v2497, %v2496
    %v2537 = vpack.c.b16 %v2499, %v2498
    %v2538 = vpack.c.b16 %v2501, %v2500
    %v2539 = vpack.c.b16 %v2503, %v2502
    %v2540 = vpack.c.b16 %v2505, %v2504
    %v2541 = vpack.c.b16 %v2507, %v2506
    %v2542 = vpack.c.b16 %v2509, %v2508
    %v2543 = vpack.c.b16 %v2511, %v2510
    %2576 = vmatprep.subr.bf16.mxu0 0
    %2577 = vmatpush1.bf16.msra.mxu0 %v2519
    %2578 = vmatprep.subr.bf16.mxu0 0
    %2579 = vmatpush1.bf16.msra.mxu0 %v2518
    %2580 = vmatprep.subr.bf16.mxu0 0
    %2581 = vmatpush1.bf16.msra.mxu0 %v2517
    %2582 = vmatprep.subr.bf16.mxu0 0
    %2583 = vmatpush1.bf16.msra.mxu0 %v2516
    %2584 = vmatprep.subr.bf16.mxu0 0
    %2585 = vmatpush1.bf16.msra.mxu0 %v2515
    %2586 = vmatprep.subr.bf16.mxu0 0
    %2587 = vmatpush1.bf16.msra.mxu0 %v2514
    %2588 = vmatprep.subr.bf16.mxu0 0
    %2589 = vmatpush1.bf16.msra.mxu0 %v2513
    %2590 = vmatprep.subr.bf16.mxu0 0
    %2591 = vmatpush1.bf16.msra.mxu0 %v2512
    %2592 = vmatprep.subr.bf16.mxu0 0
    %2593 = vmatpush2.bf16.msra.mxu0 %v2527
    %2594 = vmatprep.subr.bf16.mxu0 0
    %2595 = vmatpush2.bf16.msra.mxu0 %v2526
    %2596 = vmatprep.subr.bf16.mxu0 0
    %2597 = vmatpush2.bf16.msra.mxu0 %v2525
    %2598 = vmatprep.subr.bf16.mxu0 0
    %2599 = vmatpush2.bf16.msra.mxu0 %v2524
    %2600 = vmatprep.subr.bf16.mxu0 0
    %2601 = vmatpush2.bf16.msra.mxu0 %v2523
    %2602 = vmatprep.subr.bf16.mxu0 0
    %2603 = vmatpush2.bf16.msra.mxu0 %v2522
    %2604 = vmatprep.subr.bf16.mxu0 0
    %2605 = vmatpush2.bf16.msra.mxu0 %v2521
    %2606 = vmatprep.subr.bf16.mxu0 0
    %2607 = vmatpush2.bf16.msra.mxu0 %v2520
    %2608 = vmatprep.mubr.bf16.mxu0 %v1340
    %2609 = vmatmul.mubr.bf16.gmra.mxu0 %v1339
    %v2610 = vpop.f32.mrf.mxu0
    %v2611 = vadd.f32 %v2382, %v2610
    %v2612 = vpop.f32.mrf.mxu0
    %v2613 = vpop.f32.mrf.mxu0
    %v2614 = vadd.f32 %v2382, %v2613
    %v2615 = vpop.f32.mrf.mxu0
    %2616 = vdwg.mxu0
    %2617 = vmatprep.subr.bf16.mxu0 0
    %2618 = vmatpush1.bf16.msra.mxu0 %v2535
    %2619 = vmatprep.subr.bf16.mxu0 0
    %2620 = vmatpush1.bf16.msra.mxu0 %v2534
    %2621 = vmatprep.subr.bf16.mxu0 0
    %2622 = vmatpush1.bf16.msra.mxu0 %v2533
    %2623 = vmatprep.subr.bf16.mxu0 0
    %2624 = vmatpush1.bf16.msra.mxu0 %v2532
    %2625 = vmatprep.subr.bf16.mxu0 0
    %2626 = vmatpush1.bf16.msra.mxu0 %v2531
    %2627 = vmatprep.subr.bf16.mxu0 0
    %2628 = vmatpush1.bf16.msra.mxu0 %v2530
    %2629 = vmatprep.subr.bf16.mxu0 0
    %2630 = vmatpush1.bf16.msra.mxu0 %v2529
    %2631 = vmatprep.subr.bf16.mxu0 0
    %2632 = vmatpush1.bf16.msra.mxu0 %v2528
    %2633 = vmatprep.subr.bf16.mxu0 0
    %2634 = vmatpush2.bf16.msra.mxu0 %v2543
    %2635 = vmatprep.subr.bf16.mxu0 0
    %2636 = vmatpush2.bf16.msra.mxu0 %v2542
    %2637 = vmatprep.subr.bf16.mxu0 0
    %2638 = vmatpush2.bf16.msra.mxu0 %v2541
    %2639 = vmatprep.subr.bf16.mxu0 0
    %2640 = vmatpush2.bf16.msra.mxu0 %v2540
    %2641 = vmatprep.subr.bf16.mxu0 0
    %2642 = vmatpush2.bf16.msra.mxu0 %v2539
    %2643 = vmatprep.subr.bf16.mxu0 0
    %2644 = vmatpush2.bf16.msra.mxu0 %v2538
    %2645 = vmatprep.subr.bf16.mxu0 0
    %2646 = vmatpush2.bf16.msra.mxu0 %v2537
    %2647 = vmatprep.subr.bf16.mxu0 0
    %2648 = vmatpush2.bf16.msra.mxu0 %v2536
    %2649 = vmatprep.mubr.bf16.mxu0 %v1342
    %2650 = vmatmul.mubr.bf16.gmra.mxu0 %v1341
    %v2651 = vpop.f32.mrf.mxu0
    %v2652 = vadd.f32 %v2611, %v2651
    %v2653 = vpop.f32.mrf.mxu0
    %v2654 = vpop.f32.mrf.mxu0
    %v2655 = vadd.f32 %v2614, %v2654
    %v2656 = vpop.f32.mrf.mxu0
    %2657 = vdwg.mxu0
    %2658 = vmatprep.subr.bf16.mxu0 0
    %2659 = vmatpush1.bf16.msra.mxu0 %v2519
    %2660 = vmatprep.subr.bf16.mxu0 0
    %2661 = vmatpush1.bf16.msra.mxu0 %v2518
    %2662 = vmatprep.subr.bf16.mxu0 0
    %2663 = vmatpush1.bf16.msra.mxu0 %v2517
    %2664 = vmatprep.subr.bf16.mxu0 0
    %2665 = vmatpush1.bf16.msra.mxu0 %v2516
    %2666 = vmatprep.subr.bf16.mxu0 0
    %2667 = vmatpush1.bf16.msra.mxu0 %v2515
    %2668 = vmatprep.subr.bf16.mxu0 0
    %2669 = vmatpush1.bf16.msra.mxu0 %v2514
    %2670 = vmatprep.subr.bf16.mxu0 0
    %2671 = vmatpush1.bf16.msra.mxu0 %v2513
    %2672 = vmatprep.subr.bf16.mxu0 0
    %2673 = vmatpush1.bf16.msra.mxu0 %v2512
    %2674 = vmatprep.subr.bf16.mxu0 0
    %2675 = vmatpush2.bf16.msra.mxu0 %v2527
    %2676 = vmatprep.subr.bf16.mxu0 0
    %2677 = vmatpush2.bf16.msra.mxu0 %v2526
    %2678 = vmatprep.subr.bf16.mxu0 0
    %2679 = vmatpush2.bf16.msra.mxu0 %v2525
    %2680 = vmatprep.subr.bf16.mxu0 0
    %2681 = vmatpush2.bf16.msra.mxu0 %v2524
    %2682 = vmatprep.subr.bf16.mxu0 0
    %2683 = vmatpush2.bf16.msra.mxu0 %v2523
    %2684 = vmatprep.subr.bf16.mxu0 0
    %2685 = vmatpush2.bf16.msra.mxu0 %v2522
    %2686 = vmatprep.subr.bf16.mxu0 0
    %2687 = vmatpush2.bf16.msra.mxu0 %v2521
    %2688 = vmatprep.subr.bf16.mxu0 0
    %2689 = vmatpush2.bf16.msra.mxu0 %v2520
    %2690 = vmatprep.mubr.bf16.mxu0 %v2310
    %2691 = vmatmul.mubr.bf16.gmra.mxu0 %v2309
    %v2692 = vpop.f32.mrf.mxu0
    %v2693 = vadd.f32 %v2382, %v2692
    %v2694 = vpop.f32.mrf.mxu0
    %v2695 = vpop.f32.mrf.mxu0
    %v2696 = vadd.f32 %v2382, %v2695
    %v2697 = vpop.f32.mrf.mxu0
    %2698 = vdwg.mxu0
    %2699 = vmatprep.subr.bf16.mxu0 0
    %2700 = vmatpush1.bf16.msra.mxu0 %v2535
    %2701 = vmatprep.subr.bf16.mxu0 0
    %2702 = vmatpush1.bf16.msra.mxu0 %v2534
    %2703 = vmatprep.subr.bf16.mxu0 0
    %2704 = vmatpush1.bf16.msra.mxu0 %v2533
    %2705 = vmatprep.subr.bf16.mxu0 0
    %2706 = vmatpush1.bf16.msra.mxu0 %v2532
    %2707 = vmatprep.subr.bf16.mxu0 0
    %2708 = vmatpush1.bf16.msra.mxu0 %v2531
    %2709 = vmatprep.subr.bf16.mxu0 0
    %2710 = vmatpush1.bf16.msra.mxu0 %v2530
    %2711 = vmatprep.subr.bf16.mxu0 0
    %2712 = vmatpush1.bf16.msra.mxu0 %v2529
    %2713 = vmatprep.subr.bf16.mxu0 0
    %2714 = vmatpush1.bf16.msra.mxu0 %v2528
    %2715 = vmatprep.subr.bf16.mxu0 0
    %2716 = vmatpush2.bf16.msra.mxu0 %v2543
    %2717 = vmatprep.subr.bf16.mxu0 0
    %2718 = vmatpush2.bf16.msra.mxu0 %v2542
    %2719 = vmatprep.subr.bf16.mxu0 0
    %2720 = vmatpush2.bf16.msra.mxu0 %v2541
    %2721 = vmatprep.subr.bf16.mxu0 0
    %2722 = vmatpush2.bf16.msra.mxu0 %v2540
    %2723 = vmatprep.subr.bf16.mxu0 0
    %2724 = vmatpush2.bf16.msra.mxu0 %v2539
    %2725 = vmatprep.subr.bf16.mxu0 0
    %2726 = vmatpush2.bf16.msra.mxu0 %v2538
    %2727 = vmatprep.subr.bf16.mxu0 0
    %2728 = vmatpush2.bf16.msra.mxu0 %v2537
    %2729 = vmatprep.subr.bf16.mxu0 0
    %2730 = vmatpush2.bf16.msra.mxu0 %v2536
    %2731 = vmatprep.mubr.bf16.mxu0 %v2312
    %2732 = vmatmul.mubr.bf16.gmra.mxu0 %v2311
    %v2733 = vpop.f32.mrf.mxu0
    %v2734 = vadd.f32 %v2693, %v2733
    %v2735 = vpop.f32.mrf.mxu0
    %v2736 = vpop.f32.mrf.mxu0
    %v2737 = vadd.f32 %v2696, %v2736
    %v2738 = vpop.f32.mrf.mxu0
    %2739 = vdwg.mxu0
    %v2740 = vmul.f32 %v2652, 0.5
    %v2741 = vmul.f32 %v2655, 0.5
    %v2742 = vpack.c.bf16 %v2741, %v2740
    %v2743 = vtanh.bf16.pop %v2742
    %v2744 = vunpack.c.l.bf16 %v2743
    %v2745 = vunpack.c.h.bf16 %v2743
    %v2746 = vmul.f32 %v2744, 0.5
    %v2747 = vmul.f32 %v2745, 0.5
    %v2748 = vadd.f32 %v2746, 0.5
    %v2749 = vadd.f32 %v2747, 0.5
    %v2750 = vlaneseq
    %v2751 = vand.u32 %v2750, 127
    %vm2752 = vcmp.lt.s32.totalorder %v2751, 4
    %v2753 = vsel %vm2752, %v2748, %v2734
    %v2754 = vsel %vm2752, %v2749, %v2737
    %2755 = vst [vmem:[%s9] sm:$0xff] %v2753
    %2756 = vst [vmem:[%s9 + $0x8] sm:$0xff] %v2754
    // Predicated region
    $region54: #{ppo_forward.1} parent=1 // pred_check
      _
    $region55: #{ppo_forward.1} parent=1 // pred_check_branch
      %2758 = sbr.rel (0) target = $region57
    $region56: #{ppo_forward.1} parent=1 // pred_region
      _
    $region57: #{ppo_forward.1} parent=1 // pred_fallthru
      _
    // Predicated region
    $region58: #{ppo_forward.1} parent=1 // pred_check
      _
    $region59: #{ppo_forward.1} parent=1 // pred_check_branch
      %2760 = sbr.rel (0) target = $region61
    $region60: #{ppo_forward.1} parent=1 // pred_region
      _
    $region61: #{ppo_forward.1} parent=1 // pred_fallthru
      _
    %2761 = vsyncpa [#allocation3], 1
    %2762 = vsyncpa [#allocation5], 1
    %2763 = vsyncpa [#allocation8], 1

</llo_original>
